<compile_context>
chip_gen: v7x
topology: tpu7x:2x2x1
jax: 0.10.0
libtpu: 0.0.40
codegen_flags: <defaults>
</compile_context>

<pallas_src>
import jax
import jax.numpy as jnp
from jax.experimental import pallas as pl
from jax.experimental.pallas import tpu as pltpu


D_PAD = 128                       # padded feature width (lane dim); real dims <= 50
TN = 128                          # node rows per output tile (use 256 on v6e/v7x)
TE = 256                          # edges per tile (sweep 256-512)
VMEM_LIMIT_BYTES = 48 * 1024 * 1024   # <= v7x physical 64 MiB; raise toward 96 MiB on v5e/v6e


def _round_up(x, m):
    return (x + m - 1) // m * m


def _pad2(x, rows, cols):
    out = jnp.zeros((rows, cols), jnp.float32)
    return out.at[: x.shape[0], : x.shape[1]].set(x.astype(jnp.float32))


# ----------------------------- Kernel A: edge messages -----------------------

def msg_kernel(h_ref, e_ref, src_ref, wmh_ref, wme_ref, bm_ref, msg_ref):
    te = e_ref.shape[0]
    n_pad = h_ref.shape[0]

    # Gather src-node features for this edge tile (one-hot built in VMEM only).
    src_idx = src_ref[...]                                               # (TE, 1) i32
    src_oh = (src_idx ==
              jax.lax.broadcasted_iota(jnp.int32, (te, n_pad), 1)
              ).astype(jnp.float32)                                      # (TE, N_pad)
    src_h = jnp.dot(src_oh, h_ref[...], preferred_element_type=jnp.float32)  # (TE, D)

    # message = relu(W_msg([h_src || h_e]))  (concat folded into 2 matmuls)
    msg = (jnp.dot(src_h, wmh_ref[...], preferred_element_type=jnp.float32)
           + jnp.dot(e_ref[...], wme_ref[...], preferred_element_type=jnp.float32)
           + bm_ref[...])
    msg_ref[...] = jnp.maximum(msg, 0.0)                                 # (TE, D)


# -------------------- Kernel B: segment-sum scatter + apply ------------------

def apply_kernel(h_ref, msg_ref, dst_ref, wah_ref, wan_ref, ba_ref,
                 out_ref, acc_ref):
    n = pl.program_id(0)            # node tile   (parallel axis)
    ke = pl.program_id(1)           # edge tile   (reduction axis, innermost)
    tn = out_ref.shape[0]
    te = msg_ref.shape[0]

    @pl.when(ke == 0)
    def _():
        acc_ref[...] = jnp.zeros_like(acc_ref)

    # Segment-sum scatter of this edge tile's messages into this node tile.
    dst_idx = dst_ref[...]                                               # (1, TE) i32
    row_ids = jax.lax.broadcasted_iota(jnp.int32, (tn, te), 0) + n * tn
    dst_oh = (row_ids == dst_idx).astype(jnp.float32)                    # (TN, TE)
    acc_ref[...] += jnp.dot(dst_oh, msg_ref[...], preferred_element_type=jnp.float32)

    # Apply step after the last edge tile of this node tile.
    @pl.when(ke == pl.num_programs(1) - 1)
    def _():
        out = (jnp.dot(h_ref[...], wah_ref[...], preferred_element_type=jnp.float32)
               + jnp.dot(acc_ref[...], wan_ref[...], preferred_element_type=jnp.float32)
               + ba_ref[...])
        out_ref[...] = jnp.maximum(out, 0.0)


# ----------------------------- per-layer driver -------------------------------

def gnn_layer(h_pad, e_pad, src_p, dst_p, lw):
    """One GNNLayer2 forward on padded (N_pad, 128) / (E_pad, 128) features."""
    wmh, wme, bm, wah, wan, ba = lw
    n_pad = h_pad.shape[0]
    e_rows = e_pad.shape[0]
    const2 = lambda n, k: (0, 0)

    # --- Kernel A: edge messages (computed exactly once per edge tile) ---
    msg = pl.pallas_call(
        msg_kernel,
        out_shape=jax.ShapeDtypeStruct((e_rows, D_PAD), jnp.float32),
        grid=(e_rows // TE,),
        in_specs=[
            pl.BlockSpec((n_pad, D_PAD), lambda k: (0, 0)),   # h (resident for gather)
            pl.BlockSpec((TE, D_PAD),    lambda k: (k, 0)),   # edge features
            pl.BlockSpec((TE, 1),        lambda k: (k, 0)),   # src indices
            pl.BlockSpec((D_PAD, D_PAD), lambda k: (0, 0)),   # W_msg (h part)
            pl.BlockSpec((D_PAD, D_PAD), lambda k: (0, 0)),   # W_msg (e part)
            pl.BlockSpec((1, D_PAD),     lambda k: (0, 0)),   # b_msg
        ],
        out_specs=pl.BlockSpec((TE, D_PAD), lambda k: (k, 0)),
        compiler_params=pltpu.CompilerParams(
            dimension_semantics=("parallel",),
            vmem_limit_bytes=VMEM_LIMIT_BYTES),
    )(h_pad, e_pad, src_p, wmh, wme, bm)

    # --- Kernel B: segment-sum + apply (h tiled by node rows) ---
    out = pl.pallas_call(
        apply_kernel,
        out_shape=jax.ShapeDtypeStruct((n_pad, D_PAD), jnp.float32),
        grid=(n_pad // TN, e_rows // TE),
        in_specs=[
            pl.BlockSpec((TN, D_PAD), lambda n, k: (n, 0)),   # h node tile
            pl.BlockSpec((TE, D_PAD), lambda n, k: (k, 0)),   # messages
            pl.BlockSpec((1, TE),     lambda n, k: (0, k)),   # dst indices
            pl.BlockSpec((D_PAD, D_PAD), const2),             # W_apply (h part)
            pl.BlockSpec((D_PAD, D_PAD), const2),             # W_apply (neigh part)
            pl.BlockSpec((1, D_PAD), const2),                 # b_apply
        ],
        out_specs=pl.BlockSpec((TN, D_PAD), lambda n, k: (n, 0)),
        scratch_shapes=[pltpu.VMEM((TN, D_PAD), jnp.float32)],
        compiler_params=pltpu.CompilerParams(
            dimension_semantics=("parallel", "arbitrary"),
            vmem_limit_bytes=VMEM_LIMIT_BYTES),
    )(h_pad, msg, dst_p, wah, wan, ba)
    return out


# ----------------------------- GCN2 wrapper ----------------------------------

def pad_layer_params(lp, din):
    """Split the concat-weights and zero-pad everything to the 128-lane layout."""
    Wm, bm = lp["W_msg"], lp["b_msg"]
    Wa, ba = lp["W_apply"], lp["b_apply"]
    return (_pad2(Wm[:din], D_PAD, D_PAD),          # W_msg, h part
            _pad2(Wm[din:], D_PAD, D_PAD),          # W_msg, e part
            _pad2(bm.reshape(1, -1), 1, D_PAD),
            _pad2(Wa[:din], D_PAD, D_PAD),          # W_apply, h part
            _pad2(Wa[din:], D_PAD, D_PAD),          # W_apply, neigh part
            _pad2(ba.reshape(1, -1), 1, D_PAD))


@jax.jit
def gcn2_forward(params, src, dst, nfeats, efeats):
    N, _, ndim_in = nfeats.shape
    E, _, _ = efeats.shape
    ndim_out = params["layers"][-1]["W_msg"].shape[1]

    n_pad = _round_up(max(N, TN), TN)
    e_rows = _round_up(max(E, TE), TE)

    h = _pad2(nfeats[:, 0, :], n_pad, D_PAD)                      # (N_pad, 128)
    e = _pad2(efeats[:, 0, :], e_rows, D_PAD)                     # (E_pad, 128)
    # Padded edges get src/dst == n_pad -> matched by no node row -> contribute nothing.
    src_p = jnp.full((e_rows, 1), n_pad, jnp.int32).at[:E, 0].set(src.astype(jnp.int32))
    dst_p = jnp.full((1, e_rows), n_pad, jnp.int32).at[0, :E].set(dst.astype(jnp.int32))

    din = ndim_in
    for lp in params["layers"]:
        # TODO(synk): nn.Dropout between layers is identity in eval mode; not applied.
        lw = pad_layer_params(lp, din)
        h = gnn_layer(h, e, src_p, dst_p, lw)
        din = lp["W_msg"].shape[1]
    # PyTorch: return nfeats.sum(1) over the singleton head dim; strip padding.
    return h[:N, :ndim_out]


# ----------------------------- param init ------------------------------------

def init_linear(key, fan_in, fan_out):
    """Deterministic nn.Linear-style init: U(-1/sqrt(fan_in), 1/sqrt(fan_in))."""
    kw, kb = jax.random.split(key)
    bound = 1.0 / jnp.sqrt(jnp.float32(fan_in))
    W = jax.random.uniform(kw, (fan_in, fan_out), jnp.float32, -bound, bound)
    b = jax.random.uniform(kb, (fan_out,), jnp.float32, -bound, bound)
    return W, b


def init_gcn2_params(key, ndim_in, ndim_out, edim):
    dims = [(ndim_in, 50), (50, 25), (25, ndim_out)]
    layers = []
    for (din, dout) in dims:
        key, k1, k2 = jax.random.split(key, 3)
        Wm, bm = init_linear(k1, din + edim, dout)
        Wa, ba = init_linear(k2, din + dout, dout)
        layers.append({"W_msg": Wm, "b_msg": bm, "W_apply": Wa, "b_apply": ba})
    return {"layers": layers}


# ----------------------------- pure-JAX reference ----------------------------

def gcn2_reference(params, src, dst, nfeats, efeats):
    N = nfeats.shape[0]
    h = nfeats[:, 0, :].astype(jnp.float32)
    e = efeats[:, 0, :].astype(jnp.float32)
    hp = jax.lax.Precision.HIGHEST
    for lp in params["layers"]:
        src_h = h[src]                                            # (E, din)
        msg = jnp.maximum(
            jnp.dot(jnp.concatenate([src_h, e], axis=1), lp["W_msg"], precision=hp)
            + lp["b_msg"], 0.0)
        h_neigh = jnp.zeros((N, msg.shape[1]), jnp.float32).at[dst].add(msg)
        h = jnp.maximum(
            jnp.dot(jnp.concatenate([h, h_neigh], axis=1), lp["W_apply"], precision=hp)
            + lp["b_apply"], 0.0)
    return h


# ----------------------------- main -------------------------------------------

if __name__ == "__main__":
    key = jax.random.PRNGKey(0)

    N, E = 200, 600                # exercises 2 node tiles x 3 edge tiles + padding
    ndim_in, edim, ndim_out = 8, 8, 16

    k_p, k_src, k_dst, k_n, k_e = jax.random.split(key, 5)
    params = init_gcn2_params(k_p, ndim_in, ndim_out, edim)

    src = jax.random.randint(k_src, (E,), 0, N, dtype=jnp.int32)
    dst = jax.random.randint(k_dst, (E,), 0, N, dtype=jnp.int32)
    nfeats = jax.random.normal(k_n, (N, 1, ndim_in), jnp.float32)
    efeats = jax.random.normal(k_e, (E, 1, edim), jnp.float32)

    out = gcn2_forward(params, src, dst, nfeats, efeats)
    out = jax.block_until_ready(out)

    ref = gcn2_reference(params, src, dst, nfeats, efeats)
    assert out.shape == (N, ndim_out)
    max_err = float(jnp.max(jnp.abs(out - ref)))
    assert jnp.allclose(out, ref, atol=5e-4, rtol=5e-4), f"mismatch vs reference (max abs err {max_err})"

    print("KERNEL_OK")
</pallas_src>

<mosaic_0001>
module attributes {stable_mosaic.version = 11 : i64} {
  func.func @msg_kernel(%arg0: i32, %arg1: memref<256x128xf32, #tpu.memory_space<vmem>>, %arg2: memref<256x128xf32, #tpu.memory_space<vmem>>, %arg3: memref<256x1xi32, #tpu.memory_space<vmem>>, %arg4: memref<128x128xf32, #tpu.memory_space<vmem>>, %arg5: memref<128x128xf32, #tpu.memory_space<vmem>>, %arg6: memref<1x128xf32, #tpu.memory_space<vmem>>, %arg7: memref<256x128xf32, #tpu.memory_space<vmem>>) attributes {dimension_semantics = [#tpu.dimension_semantics<parallel>], iteration_bounds = array<i64: 3>, scalar_prefetch = 0 : i64, scratch_operands = 0 : i64, tpu.core_type = #tpu.core_type<tc>, window_params = [{pipeline_mode = #tpu.pipeline_mode<synchronous>, transform_indices = @transform_0, window_bounds = array<i64: 256, 128>}, {transform_indices = @transform_1, window_bounds = array<i64: 256, 128>}, {transform_indices = @transform_2, window_bounds = array<i64: 256, 1>}, {pipeline_mode = #tpu.pipeline_mode<synchronous>, transform_indices = @transform_3, window_bounds = array<i64: 128, 128>}, {pipeline_mode = #tpu.pipeline_mode<synchronous>, transform_indices = @transform_4, window_bounds = array<i64: 128, 128>}, {pipeline_mode = #tpu.pipeline_mode<synchronous>, transform_indices = @transform_5, window_bounds = array<i64: 1, 128>}, {transform_indices = @transform_6, window_bounds = array<i64: 256, 128>}]} {
    %c0 = arith.constant 0 : index
    %c0_0 = arith.constant 0 : index
    %0 = vector.load %arg3[%c0, %c0_0] : memref<256x1xi32, #tpu.memory_space<vmem>>, vector<256x1xi32>
    %1 = tpu.iota {dimensions = array<i32: 1>} : vector<256x256xi32>
    %2 = vector.broadcast %0 : vector<256x1xi32> to vector<256x256xi32>
    %3 = arith.cmpi eq, %2, %1 : vector<256x256xi32>
    %4 = arith.extui %3 : vector<256x256xi1> to vector<256x256xi32>
    %5 = arith.sitofp %4 : vector<256x256xi32> to vector<256x256xf32>
    %c0_1 = arith.constant 0 : index
    %c0_2 = arith.constant 0 : index
    %6 = vector.load %arg1[%c0_1, %c0_2] : memref<256x128xf32, #tpu.memory_space<vmem>>, vector<256x128xf32>
    %cst = arith.constant dense<0.000000e+00> : vector<256x128xf32>
    %7 = tpu.matmul %5, %6, %cst {dimension_numbers = #tpu.dot_dimension_numbers<[1], [0], [0], [1], [0, 0, 1, 1], [], []>} : vector<256x256xf32>, vector<256x128xf32>, vector<256x128xf32> -> vector<256x128xf32>
    %c0_3 = arith.constant 0 : index
    %c0_4 = arith.constant 0 : index
    %8 = vector.load %arg4[%c0_3, %c0_4] : memref<128x128xf32, #tpu.memory_space<vmem>>, vector<128x128xf32>
    %cst_5 = arith.constant dense<0.000000e+00> : vector<256x128xf32>
    %9 = tpu.matmul %7, %8, %cst_5 {dimension_numbers = #tpu.dot_dimension_numbers<[1], [0], [0], [1], [0, 0, 1, 1], [], []>} : vector<256x128xf32>, vector<128x128xf32>, vector<256x128xf32> -> vector<256x128xf32>
    %c0_6 = arith.constant 0 : index
    %c0_7 = arith.constant 0 : index
    %10 = vector.load %arg2[%c0_6, %c0_7] : memref<256x128xf32, #tpu.memory_space<vmem>>, vector<256x128xf32>
    %c0_8 = arith.constant 0 : index
    %c0_9 = arith.constant 0 : index
    %11 = vector.load %arg5[%c0_8, %c0_9] : memref<128x128xf32, #tpu.memory_space<vmem>>, vector<128x128xf32>
    %cst_10 = arith.constant dense<0.000000e+00> : vector<256x128xf32>
    %12 = tpu.matmul %10, %11, %cst_10 {dimension_numbers = #tpu.dot_dimension_numbers<[1], [0], [0], [1], [0, 0, 1, 1], [], []>} : vector<256x128xf32>, vector<128x128xf32>, vector<256x128xf32> -> vector<256x128xf32>
    %13 = arith.addf %9, %12 : vector<256x128xf32>
    %c0_11 = arith.constant 0 : index
    %c0_12 = arith.constant 0 : index
    %14 = vector.load %arg6[%c0_11, %c0_12] : memref<1x128xf32, #tpu.memory_space<vmem>>, vector<1x128xf32>
    %15 = vector.broadcast %14 : vector<1x128xf32> to vector<256x128xf32>
    %16 = arith.addf %13, %15 : vector<256x128xf32>
    %cst_13 = arith.constant 0.000000e+00 : f32
    %17 = vector.broadcast %cst_13 : f32 to vector<256x128xf32>
    %18 = arith.maximumf %16, %17 : vector<256x128xf32>
    %c0_14 = arith.constant 0 : index
    %c0_15 = arith.constant 0 : index
    %19 = vector.load %arg7[%c0_14, %c0_15] : memref<256x128xf32, #tpu.memory_space<vmem>>, vector<256x128xf32>
    tpu.vector_store %arg7[%c0_14, %c0_15], %18 {strides = array<i32>} : memref<256x128xf32, #tpu.memory_space<vmem>>, vector<256x128xf32>,
    return
  }
  func.func @transform_0(%arg0: i32) -> (i32, i32) {
    %c0_i32 = arith.constant 0 : i32
    %c0_i32_0 = arith.constant 0 : i32
    %c0_i32_1 = arith.constant 0 : i32
    return %c0_i32, %c0_i32_0 : i32, i32
  }
  func.func @transform_1(%arg0: i32) -> (i32, i32) {
    %c0_i32 = arith.constant 0 : i32
    %c0_i32_0 = arith.constant 0 : i32
    return %arg0, %c0_i32 : i32, i32
  }
  func.func @transform_2(%arg0: i32) -> (i32, i32) {
    %c0_i32 = arith.constant 0 : i32
    %c0_i32_0 = arith.constant 0 : i32
    return %arg0, %c0_i32 : i32, i32
  }
  func.func @transform_3(%arg0: i32) -> (i32, i32) {
    %c0_i32 = arith.constant 0 : i32
    %c0_i32_0 = arith.constant 0 : i32
    %c0_i32_1 = arith.constant 0 : i32
    return %c0_i32, %c0_i32_0 : i32, i32
  }
  func.func @transform_4(%arg0: i32) -> (i32, i32) {
    %c0_i32 = arith.constant 0 : i32
    %c0_i32_0 = arith.constant 0 : i32
    %c0_i32_1 = arith.constant 0 : i32
    return %c0_i32, %c0_i32_0 : i32, i32
  }
  func.func @transform_5(%arg0: i32) -> (i32, i32) {
    %c0_i32 = arith.constant 0 : i32
    %c0_i32_0 = arith.constant 0 : i32
    %c0_i32_1 = arith.constant 0 : i32
    return %c0_i32, %c0_i32_0 : i32, i32
  }
  func.func @transform_6(%arg0: i32) -> (i32, i32) {
    %c0_i32 = arith.constant 0 : i32
    %c0_i32_0 = arith.constant 0 : i32
    return %arg0, %c0_i32 : i32, i32
  }
}

module attributes {stable_mosaic.version = 11 : i64} {
  func.func @apply_kernel(%arg0: i32, %arg1: i32, %arg2: memref<128x128xf32, #tpu.memory_space<vmem>>, %arg3: memref<256x128xf32, #tpu.memory_space<vmem>>, %arg4: memref<1x256xi32, #tpu.memory_space<vmem>>, %arg5: memref<128x128xf32, #tpu.memory_space<vmem>>, %arg6: memref<128x128xf32, #tpu.memory_space<vmem>>, %arg7: memref<1x128xf32, #tpu.memory_space<vmem>>, %arg8: memref<128x128xf32, #tpu.memory_space<vmem>>, %arg9: memref<128x128xf32, #tpu.memory_space<vmem>>) attributes {dimension_semantics = [#tpu.dimension_semantics<parallel>, #tpu.dimension_semantics<arbitrary>], iteration_bounds = array<i64: 2, 3>, scalar_prefetch = 0 : i64, scratch_operands = 1 : i64, tpu.core_type = #tpu.core_type<tc>, window_params = [{transform_indices = @transform_0, window_bounds = array<i64: 128, 128>}, {transform_indices = @transform_1, window_bounds = array<i64: 256, 128>}, {transform_indices = @transform_2, window_bounds = array<i64: 1, 256>}, {pipeline_mode = #tpu.pipeline_mode<synchronous>, transform_indices = @transform_3, window_bounds = array<i64: 128, 128>}, {pipeline_mode = #tpu.pipeline_mode<synchronous>, transform_indices = @transform_4, window_bounds = array<i64: 128, 128>}, {pipeline_mode = #tpu.pipeline_mode<synchronous>, transform_indices = @transform_5, window_bounds = array<i64: 1, 128>}, {transform_indices = @transform_6, window_bounds = array<i64: 128, 128>}]} {
    %c0_i32 = arith.constant 0 : i32
    %0 = arith.cmpi eq, %arg1, %c0_i32 : i32
    %1 = arith.extui %0 : i1 to i32
    %c0_i32_0 = arith.constant 0 : i32
    %2 = arith.cmpi ne, %1, %c0_i32_0 : i32
    scf.if %2 {
      %cst_9 = arith.constant 0.000000e+00 : f32
      %20 = vector.broadcast %cst_9 : f32 to vector<128x128xf32>
      %c0_10 = arith.constant 0 : index
      %c0_11 = arith.constant 0 : index
      %21 = vector.load %arg9[%c0_10, %c0_11] : memref<128x128xf32, #tpu.memory_space<vmem>>, vector<128x128xf32>
      tpu.vector_store %arg9[%c0_10, %c0_11], %20 {strides = array<i32>} : memref<128x128xf32, #tpu.memory_space<vmem>>, vector<128x128xf32>,
    } else {
    }
    %c0 = arith.constant 0 : index
    %c0_1 = arith.constant 0 : index
    %3 = vector.load %arg4[%c0, %c0_1] : memref<1x256xi32, #tpu.memory_space<vmem>>, vector<1x256xi32>
    %4 = tpu.iota {dimensions = array<i32: 0>} : vector<128x256xi32>
    %c128_i32 = arith.constant 128 : i32
    %5 = arith.muli %arg0, %c128_i32 : i32
    %6 = vector.broadcast %5 : i32 to vector<128x256xi32>
    %7 = arith.addi %4, %6 : vector<128x256xi32>
    %8 = vector.broadcast %3 : vector<1x256xi32> to vector<128x256xi32>
    %9 = arith.cmpi eq, %7, %8 : vector<128x256xi32>
    %10 = arith.extui %9 : vector<128x256xi1> to vector<128x256xi32>
    %11 = arith.sitofp %10 : vector<128x256xi32> to vector<128x256xf32>
    %c0_2 = arith.constant 0 : index
    %c0_3 = arith.constant 0 : index
    %12 = vector.load %arg9[%c0_2, %c0_3] : memref<128x128xf32, #tpu.memory_space<vmem>>, vector<128x128xf32>
    %c0_4 = arith.constant 0 : index
    %c0_5 = arith.constant 0 : index
    %13 = vector.load %arg3[%c0_4, %c0_5] : memref<256x128xf32, #tpu.memory_space<vmem>>, vector<256x128xf32>
    %cst = arith.constant dense<0.000000e+00> : vector<128x128xf32>
    %14 = tpu.matmul %11, %13, %cst {dimension_numbers = #tpu.dot_dimension_numbers<[1], [0], [0], [1], [0, 0, 1, 1], [], []>} : vector<128x256xf32>, vector<256x128xf32>, vector<128x128xf32> -> vector<128x128xf32>
    %15 = arith.addf %12, %14 : vector<128x128xf32>
    %c0_6 = arith.constant 0 : index
    %c0_7 = arith.constant 0 : index
    %16 = vector.load %arg9[%c0_6, %c0_7] : memref<128x128xf32, #tpu.memory_space<vmem>>, vector<128x128xf32>
    tpu.vector_store %arg9[%c0_6, %c0_7], %15 {strides = array<i32>} : memref<128x128xf32, #tpu.memory_space<vmem>>, vector<128x128xf32>,
    %c2_i32 = arith.constant 2 : i32
    %17 = arith.cmpi eq, %arg1, %c2_i32 : i32
    %18 = arith.extui %17 : i1 to i32
    %c0_i32_8 = arith.constant 0 : i32
    %19 = arith.cmpi ne, %18, %c0_i32_8 : i32
    scf.if %19 {
      %c0_9 = arith.constant 0 : index
      %c0_10 = arith.constant 0 : index
      %20 = vector.load %arg2[%c0_9, %c0_10] : memref<128x128xf32, #tpu.memory_space<vmem>>, vector<128x128xf32>
      %c0_11 = arith.constant 0 : index
      %c0_12 = arith.constant 0 : index
      %21 = vector.load %arg5[%c0_11, %c0_12] : memref<128x128xf32, #tpu.memory_space<vmem>>, vector<128x128xf32>
      %cst_13 = arith.constant dense<0.000000e+00> : vector<128x128xf32>
      %22 = tpu.matmul %20, %21, %cst_13 {dimension_numbers = #tpu.dot_dimension_numbers<[1], [0], [0], [1], [0, 0, 1, 1], [], []>} : vector<128x128xf32>, vector<128x128xf32>, vector<128x128xf32> -> vector<128x128xf32>
      %c0_14 = arith.constant 0 : index
      %c0_15 = arith.constant 0 : index
      %23 = vector.load %arg9[%c0_14, %c0_15] : memref<128x128xf32, #tpu.memory_space<vmem>>, vector<128x128xf32>
      %c0_16 = arith.constant 0 : index
      %c0_17 = arith.constant 0 : index
      %24 = vector.load %arg6[%c0_16, %c0_17] : memref<128x128xf32, #tpu.memory_space<vmem>>, vector<128x128xf32>
      %cst_18 = arith.constant dense<0.000000e+00> : vector<128x128xf32>
      %25 = tpu.matmul %23, %24, %cst_18 {dimension_numbers = #tpu.dot_dimension_numbers<[1], [0], [0], [1], [0, 0, 1, 1], [], []>} : vector<128x128xf32>, vector<128x128xf32>, vector<128x128xf32> -> vector<128x128xf32>
      %26 = arith.addf %22, %25 : vector<128x128xf32>
      %c0_19 = arith.constant 0 : index
      %c0_20 = arith.constant 0 : index
      %27 = vector.load %arg7[%c0_19, %c0_20] : memref<1x128xf32, #tpu.memory_space<vmem>>, vector<1x128xf32>
      %28 = vector.broadcast %27 : vector<1x128xf32> to vector<128x128xf32>
      %29 = arith.addf %26, %28 : vector<128x128xf32>
      %cst_21 = arith.constant 0.000000e+00 : f32
      %30 = vector.broadcast %cst_21 : f32 to vector<128x128xf32>
      %31 = arith.maximumf %29, %30 : vector<128x128xf32>
      %c0_22 = arith.constant 0 : index
      %c0_23 = arith.constant 0 : index
      %32 = vector.load %arg8[%c0_22, %c0_23] : memref<128x128xf32, #tpu.memory_space<vmem>>, vector<128x128xf32>
      tpu.vector_store %arg8[%c0_22, %c0_23], %31 {strides = array<i32>} : memref<128x128xf32, #tpu.memory_space<vmem>>, vector<128x128xf32>,
    } else {
    }
    return
  }
  func.func @transform_0(%arg0: i32, %arg1: i32) -> (i32, i32) {
    %c0_i32 = arith.constant 0 : i32
    %c0_i32_0 = arith.constant 0 : i32
    return %arg0, %c0_i32 : i32, i32
  }
  func.func @transform_1(%arg0: i32, %arg1: i32) -> (i32, i32) {
    %c0_i32 = arith.constant 0 : i32
    %c0_i32_0 = arith.constant 0 : i32
    return %arg1, %c0_i32 : i32, i32
  }
  func.func @transform_2(%arg0: i32, %arg1: i32) -> (i32, i32) {
    %c0_i32 = arith.constant 0 : i32
    %c0_i32_0 = arith.constant 0 : i32
    return %c0_i32, %arg1 : i32, i32
  }
  func.func @transform_3(%arg0: i32, %arg1: i32) -> (i32, i32) {
    %c0_i32 = arith.constant 0 : i32
    %c0_i32_0 = arith.constant 0 : i32
    %c0_i32_1 = arith.constant 0 : i32
    return %c0_i32, %c0_i32_0 : i32, i32
  }
  func.func @transform_4(%arg0: i32, %arg1: i32) -> (i32, i32) {
    %c0_i32 = arith.constant 0 : i32
    %c0_i32_0 = arith.constant 0 : i32
    %c0_i32_1 = arith.constant 0 : i32
    return %c0_i32, %c0_i32_0 : i32, i32
  }
  func.func @transform_5(%arg0: i32, %arg1: i32) -> (i32, i32) {
    %c0_i32 = arith.constant 0 : i32
    %c0_i32_0 = arith.constant 0 : i32
    %c0_i32_1 = arith.constant 0 : i32
    return %c0_i32, %c0_i32_0 : i32, i32
  }
  func.func @transform_6(%arg0: i32, %arg1: i32) -> (i32, i32) {
    %c0_i32 = arith.constant 0 : i32
    %c0_i32_0 = arith.constant 0 : i32
    return %arg0, %c0_i32 : i32, i32
  }
}

</mosaic_0001>

<llo_original>
// kernel: gcn2_forward.7
$region0: #{gcn2_forward.7}
  #allocation0 [shape = 'u32[]', space=smem, size = 0x4, offset = 0x4, fixed_abs, tag = 'smem constant byte address 0x4 - core index']
  #allocation1 [shape = 'u32[144,128]{1,0:T(1,128)}', space=vmem, size = 0x12000, scoped, tag = 'internal scratch']
  #allocation2 [shape = 'f32[128,128]{1,0:T(8,128)}', space=vmem, size = 0x10000, scoped, tag = 'scratch operand']
  %s0 = inlined_call_operand.vmem [shape: f32[256,128], index: 0, kind: input, shape index: {}]
  %s1 = inlined_call_operand.vmem [shape: f32[768,128], index: 1, kind: input, shape index: {}]
  %s2 = inlined_call_operand.vmem [shape: s32[1,768], index: 2, kind: input, shape index: {}]
  %s3 = inlined_call_operand.vmem [shape: f32[128,128], index: 3, kind: input, shape index: {}]
  %s4 = inlined_call_operand.vmem [shape: f32[128,128], index: 4, kind: input, shape index: {}]
  %s5 = inlined_call_operand.vmem [shape: f32[1,128], index: 5, kind: input, shape index: {}]
  %s6 = inlined_call_operand.vmem [shape: f32[256,128], index: 6, kind: output, shape index: {}]
  %s7 = sld [smem:[#allocation0]]
  $region65: #{gcn2_forward.7} parent=0
    _
  %s9 = ssub.s32 1, %s7
  %s10 = scalar_select 0, %s9, %s7
  loop: start=0, step=1, limit=8
  $region2: #{gcn2_forward.7} parent=0 // loop_pre_header
    _
  $region3: #{gcn2_forward.7} parent=0 // loop_header
    %s12 = sphi 0, %s16
    %p13 = scmp.ge.s32.totalorder %s12, 8
    %s19 = sphi 0, %s31
    %s20 = sphi 0, %s27
    %s21 = sphi 0, %s19
    %s22 = sphi 0, %s20
    %s23 = sphi 0, %s21
    %s24 = sphi 0, %s22
    %s34 = sphi 0, %s36
    %s37 = sphi 0, %s34
    %s38 = sphi 0, %s37
    %s54 = sphi 0, %s38
    %s60 = sphi 0, %s62
    %s63 = sphi 0, %s60
    %s64 = sphi 0, %s63
    %s80 = sphi 0, %s64
    %s86 = sphi 0, %s88
    %s89 = sphi 0, %s86
    %s90 = sphi 0, %s89
    %s106 = sphi 0, %s90
    %s110 = sphi 0, %s110
    %s112 = sphi 0, %s110
    %s113 = sphi 0, %s112
    %s127 = sphi 0, %s113
    %s131 = sphi 0, %s131
    %s133 = sphi 0, %s131
    %s134 = sphi 0, %s133
    %s148 = sphi 0, %s134
    %s152 = sphi 0, %s152
    %s154 = sphi 0, %s152
    %s155 = sphi 0, %s154
    %s169 = sphi 0, %s155
    %s175 = sphi 0, %s177
    %s178 = sphi 0, %s175
    %s179 = sphi 0, %s178
    %s195 = sphi 0, %s179
  $region4: #{gcn2_forward.7} parent=0 // loop_header_branch
    %15 = sbr.rel (%p13) target = $region8
  $region5: #{gcn2_forward.7} parent=0 // loop_body
    %s17 = ssub.s32 %s12, 1
    %s18 = ssub.s32 %s12, 2
    %s25 = sadd.s32 1, %s20
    %p26 = scmp.ge.s32.totalorder %s25, 3
    %s27 = scalar_select %p26, 0, %s25
    %s28 = sadd.s32 1, %s19
    %s29 = scalar_select %p26, %s28, %s19
    %p30 = scmp.ge.s32.totalorder %s29, 2
    %s31 = scalar_select %p30, 0, %s29
    %s32 = ssub.s32 %s19, %s31
    %p33 = scmp.eq.s32.totalorder %s32, 0
    %s35 = sadd.s32 %s34, 1
    %s36 = scalar_select %p33, %s34, %s35
    %p39 = pneg %p33
    %p40 = scmp.eq.s32.totalorder %s12, 5
    %p41 = por %p39, %p40
    %p42 = scmp.ne.s32.totalorder %s34, %s37
    %p43 = scmp.eq.s32.totalorder %s12, 0
    %p44 = por %p42, %p43
    %p45 = scmp.ne.s32.totalorder %s34, %s37
    %p46 = scmp.eq.s32.totalorder %s17, 5
    %p47 = por %p45, %p46
    %p48 = scmp.ne.s32.totalorder %s37, %s38
    %p49 = scmp.eq.s32.totalorder %s17, 0
    %p50 = por %p48, %p49
    %p51 = scmp.ne.s32.totalorder %s37, %s38
    %p52 = scmp.eq.s32.totalorder %s18, 5
    %p53 = por %p51, %p52
    %p55 = scmp.ne.s32.totalorder %s38, %s54
    %p56 = scmp.eq.s32.totalorder %s18, 0
    %p57 = por %p55, %p56
    %s58 = ssub.s32 %s20, %s27
    %p59 = scmp.eq.s32.totalorder %s58, 0
    %s61 = sadd.s32 %s60, 1
    %s62 = scalar_select %p59, %s60, %s61
    %p65 = pneg %p59
    %p66 = scmp.eq.s32.totalorder %s12, 5
    %p67 = por %p65, %p66
    %p68 = scmp.ne.s32.totalorder %s60, %s63
    %p69 = scmp.eq.s32.totalorder %s12, 0
    %p70 = por %p68, %p69
    %p71 = scmp.ne.s32.totalorder %s60, %s63
    %p72 = scmp.eq.s32.totalorder %s17, 5
    %p73 = por %p71, %p72
    %p74 = scmp.ne.s32.totalorder %s63, %s64
    %p75 = scmp.eq.s32.totalorder %s17, 0
    %p76 = por %p74, %p75
    %p77 = scmp.ne.s32.totalorder %s63, %s64
    %p78 = scmp.eq.s32.totalorder %s18, 5
    %p79 = por %p77, %p78
    %p81 = scmp.ne.s32.totalorder %s64, %s80
    %p82 = scmp.eq.s32.totalorder %s18, 0
    %p83 = por %p81, %p82
    %s84 = ssub.s32 %s20, %s27
    %p85 = scmp.eq.s32.totalorder %s84, 0
    %s87 = sadd.s32 %s86, 1
    %s88 = scalar_select %p85, %s86, %s87
    %p91 = pneg %p85
    %p92 = scmp.eq.s32.totalorder %s12, 5
    %p93 = por %p91, %p92
    %p94 = scmp.ne.s32.totalorder %s86, %s89
    %p95 = scmp.eq.s32.totalorder %s12, 0
    %p96 = por %p94, %p95
    %p97 = scmp.ne.s32.totalorder %s86, %s89
    %p98 = scmp.eq.s32.totalorder %s17, 5
    %p99 = por %p97, %p98
    %p100 = scmp.ne.s32.totalorder %s89, %s90
    %p101 = scmp.eq.s32.totalorder %s17, 0
    %p102 = por %p100, %p101
    %p103 = scmp.ne.s32.totalorder %s89, %s90
    %p104 = scmp.eq.s32.totalorder %s18, 5
    %p105 = por %p103, %p104
    %p107 = scmp.ne.s32.totalorder %s90, %s106
    %p108 = scmp.eq.s32.totalorder %s18, 0
    %p109 = por %p107, %p108
    %s111 = sadd.s32 %s110, 1
    %p114 = scmp.eq.s32.totalorder %s12, 5
    %p115 = scmp.ne.s32.totalorder %s110, %s112
    %p116 = scmp.eq.s32.totalorder %s12, 0
    %p117 = por %p115, %p116
    %p118 = scmp.ne.s32.totalorder %s110, %s112
    %p119 = scmp.eq.s32.totalorder %s17, 5
    %p120 = por %p118, %p119
    %p121 = scmp.ne.s32.totalorder %s112, %s113
    %p122 = scmp.eq.s32.totalorder %s17, 0
    %p123 = por %p121, %p122
    %p124 = scmp.ne.s32.totalorder %s112, %s113
    %p125 = scmp.eq.s32.totalorder %s18, 5
    %p126 = por %p124, %p125
    %p128 = scmp.ne.s32.totalorder %s113, %s127
    %p129 = scmp.eq.s32.totalorder %s18, 0
    %p130 = por %p128, %p129
    %s132 = sadd.s32 %s131, 1
    %p135 = scmp.eq.s32.totalorder %s12, 5
    %p136 = scmp.ne.s32.totalorder %s131, %s133
    %p137 = scmp.eq.s32.totalorder %s12, 0
    %p138 = por %p136, %p137
    %p139 = scmp.ne.s32.totalorder %s131, %s133
    %p140 = scmp.eq.s32.totalorder %s17, 5
    %p141 = por %p139, %p140
    %p142 = scmp.ne.s32.totalorder %s133, %s134
    %p143 = scmp.eq.s32.totalorder %s17, 0
    %p144 = por %p142, %p143
    %p145 = scmp.ne.s32.totalorder %s133, %s134
    %p146 = scmp.eq.s32.totalorder %s18, 5
    %p147 = por %p145, %p146
    %p149 = scmp.ne.s32.totalorder %s134, %s148
    %p150 = scmp.eq.s32.totalorder %s18, 0
    %p151 = por %p149, %p150
    %s153 = sadd.s32 %s152, 1
    %p156 = scmp.eq.s32.totalorder %s12, 5
    %p157 = scmp.ne.s32.totalorder %s152, %s154
    %p158 = scmp.eq.s32.totalorder %s12, 0
    %p159 = por %p157, %p158
    %p160 = scmp.ne.s32.totalorder %s152, %s154
    %p161 = scmp.eq.s32.totalorder %s17, 5
    %p162 = por %p160, %p161
    %p163 = scmp.ne.s32.totalorder %s154, %s155
    %p164 = scmp.eq.s32.totalorder %s17, 0
    %p165 = por %p163, %p164
    %p166 = scmp.ne.s32.totalorder %s154, %s155
    %p167 = scmp.eq.s32.totalorder %s18, 5
    %p168 = por %p166, %p167
    %p170 = scmp.ne.s32.totalorder %s155, %s169
    %p171 = scmp.eq.s32.totalorder %s18, 0
    %p172 = por %p170, %p171
    %s173 = ssub.s32 %s19, %s31
    %p174 = scmp.eq.s32.totalorder %s173, 0
    %s176 = sadd.s32 %s175, 1
    %s177 = scalar_select %p174, %s175, %s176
    %p180 = pneg %p174
    %p181 = scmp.eq.s32.totalorder %s12, 5
    %p182 = por %p180, %p181
    %p183 = scmp.ne.s32.totalorder %s175, %s178
    %p184 = scmp.eq.s32.totalorder %s12, 0
    %p185 = por %p183, %p184
    %p186 = scmp.ne.s32.totalorder %s175, %s178
    %p187 = scmp.eq.s32.totalorder %s17, 5
    %p188 = por %p186, %p187
    %p189 = scmp.ne.s32.totalorder %s178, %s179
    %p190 = scmp.eq.s32.totalorder %s17, 0
    %p191 = por %p189, %p190
    %p192 = scmp.ne.s32.totalorder %s178, %s179
    %p193 = scmp.eq.s32.totalorder %s18, 5
    %p194 = por %p192, %p193
    %p196 = scmp.ne.s32.totalorder %s179, %s195
    %p197 = scmp.eq.s32.totalorder %s18, 0
    %p198 = por %p196, %p197
    %p199 = scmp.le.s32.totalorder 1, %s12
    %p200 = scmp.lt.s32.totalorder %s12, 7
    %p201 = pnand %p199, %p200
    %p202 = pneg %p201
    // Predicated region
    $region9: #{gcn2_forward.7} parent=5 // pred_check
      _
    $region10: #{gcn2_forward.7} parent=5 // pred_check_branch
      %204 = sbr.rel (%p201) target = $region12
    $region11: #{gcn2_forward.7} parent=5 // pred_region
      %s205 = ssub.s32 %s12, 1
      // Predicated region
      $region13: #{gcn2_forward.7} parent=11 // pred_check
        %p206 = pneg %p123
      $region14: #{gcn2_forward.7} parent=11 // pred_check_branch
        %208 = sbr.rel (%p206) target = $region16
      $region15: #{gcn2_forward.7} parent=11 // pred_region
        _
      $region16: #{gcn2_forward.7} parent=11 // pred_fallthru
        _
      // Predicated region
      $region17: #{gcn2_forward.7} parent=11 // pred_check
        %p209 = pneg %p144
      $region18: #{gcn2_forward.7} parent=11 // pred_check_branch
        %211 = sbr.rel (%p209) target = $region20
      $region19: #{gcn2_forward.7} parent=11 // pred_region
        _
      $region20: #{gcn2_forward.7} parent=11 // pred_fallthru
        _
      // Predicated region
      $region21: #{gcn2_forward.7} parent=11 // pred_check
        %p212 = pneg %p165
      $region22: #{gcn2_forward.7} parent=11 // pred_check_branch
        %214 = sbr.rel (%p212) target = $region24
      $region23: #{gcn2_forward.7} parent=11 // pred_region
        _
      $region24: #{gcn2_forward.7} parent=11 // pred_fallthru
        _
    $region12: #{gcn2_forward.7} parent=5 // pred_fallthru
      _
    %p215 = scmp.lt.s32.totalorder %s12, 6
    // Predicated region
    $region25: #{gcn2_forward.7} parent=5 // pred_check
      %p216 = pneg %p215
    $region26: #{gcn2_forward.7} parent=5 // pred_check_branch
      %218 = sbr.rel (%p216) target = $region28
    $region27: #{gcn2_forward.7} parent=5 // pred_region
      // Predicated region
      $region29: #{gcn2_forward.7} parent=27 // pred_check
        %p219 = pneg %p44
      $region30: #{gcn2_forward.7} parent=27 // pred_check_branch
        %221 = sbr.rel (%p219) target = $region32
      $region31: #{gcn2_forward.7} parent=27 // pred_region
        %s222 = smul.u32 16, %s19
        %p223 = scmp.lt.s32.totalorder %s222, 31
        %s224 = scalar_select %p223, %s222, 31
        %s225 = smul.addr %s224, 8
        %s226 = scalar_lea.vmem %s0, %s225
        %s227 = smul.u32 16, %s19
      $region32: #{gcn2_forward.7} parent=27 // pred_fallthru
        _
      // Predicated region
      $region33: #{gcn2_forward.7} parent=27 // pred_check
        %p228 = pneg %p70
      $region34: #{gcn2_forward.7} parent=27 // pred_check_branch
        %230 = sbr.rel (%p228) target = $region36
      $region35: #{gcn2_forward.7} parent=27 // pred_region
        %s231 = smul.u32 32, %s20
        %p232 = scmp.lt.s32.totalorder %s231, 95
        %s233 = scalar_select %p232, %s231, 95
        %s234 = smul.addr %s233, 8
        %s235 = scalar_lea.vmem %s1, %s234
        %s236 = smul.u32 32, %s20
      $region36: #{gcn2_forward.7} parent=27 // pred_fallthru
        _
      // Predicated region
      $region37: #{gcn2_forward.7} parent=27 // pred_check
        %p237 = pneg %p96
      $region38: #{gcn2_forward.7} parent=27 // pred_check_branch
        %239 = sbr.rel (%p237) target = $region40
      $region39: #{gcn2_forward.7} parent=27 // pred_region
        %s240 = smul.u32 2, %s20
        %p241 = scmp.lt.s32.totalorder %s240, 5
        %s242 = scalar_select %p241, %s240, 5
        %s243 = scalar_lea.vmem %s2, %s242
        %s244 = smul.u32 2, %s20
      $region40: #{gcn2_forward.7} parent=27 // pred_fallthru
        _
    $region28: #{gcn2_forward.7} parent=5 // pred_fallthru
      _
    %p245 = scmp.le.s32.totalorder 1, %s12
    %p246 = scmp.lt.s32.totalorder %s12, 7
    %p247 = pnand %p245, %p246
    %p248 = pneg %p247
    // Predicated region
    $region41: #{gcn2_forward.7} parent=5 // pred_check
      _
    $region42: #{gcn2_forward.7} parent=5 // pred_check_branch
      %250 = sbr.rel (%p247) target = $region44
    $region43: #{gcn2_forward.7} parent=5 // pred_region
      %s251 = ssub.s32 %s12, 1
      %s252 = smul.u32 16, %s21
      %p253 = scmp.lt.s32.totalorder %s252, 31
      %s254 = scalar_select %p253, %s252, 31
      %s255 = smul.addr %s254, 8
      %s256 = scalar_lea.vmem %s0, %s255
      %p257 = pneg %p50
      %p258 = pneg %p47
      %s259 = smul.u32 32, %s22
      %p260 = scmp.lt.s32.totalorder %s259, 95
      %s261 = scalar_select %p260, %s259, 95
      %s262 = smul.addr %s261, 8
      %s263 = scalar_lea.vmem %s1, %s262
      %p264 = pneg %p76
      %p265 = pneg %p73
      %s266 = smul.u32 2, %s22
      %p267 = scmp.lt.s32.totalorder %s266, 5
      %s268 = scalar_select %p267, %s266, 5
      %s269 = scalar_lea.vmem %s2, %s268
      %p270 = pneg %p102
      %p271 = pneg %p99
      %p272 = pneg %p123
      %p273 = pneg %p120
      %p274 = pneg %p144
      %p275 = pneg %p141
      %p276 = pneg %p165
      %p277 = pneg %p162
      %p278 = pneg %p191
      %p279 = pneg %p188
      %s280 = smul.u32 16, %s21
      %p281 = scmp.lt.s32.totalorder %s280, 31
      %s282 = scalar_select %p281, %s280, 31
      %s283 = smul.addr %s282, 8
      %s284 = scalar_lea.vmem %s6, %s283
      %s285 = smul.u32 16, %s21
      %p286 = scmp.lt.s32.totalorder %s285, 31
      %s287 = scalar_select %p286, %s285, 31
      %s288 = smul.addr %s287, 8
      %s289 = scalar_lea.vmem %s0, %s288
      %s290 = smul.u32 16, %s21
      %s291 = smul.u32 32, %s22
      %p292 = scmp.lt.s32.totalorder %s291, 95
      %s293 = scalar_select %p292, %s291, 95
      %s294 = smul.addr %s293, 8
      %s295 = scalar_lea.vmem %s1, %s294
      %s296 = smul.u32 32, %s22
      %s297 = smul.u32 2, %s22
      %p298 = scmp.lt.s32.totalorder %s297, 5
      %s299 = scalar_select %p298, %s297, 5
      %s300 = scalar_lea.vmem %s2, %s299
      %s301 = smul.u32 2, %s22
      %s302 = smul.u32 16, %s21
      %p303 = scmp.lt.s32.totalorder %s302, 31
      %s304 = scalar_select %p303, %s302, 31
      %s305 = smul.addr %s304, 8
      %s306 = scalar_lea.vmem %s6, %s305
      %s307 = smul.u32 16, %s21
      %p308 = scmp.eq.s32.totalorder %s22, 0
      // Predicated region
      $region45: #{gcn2_forward.7} parent=43 // pred_check
        %p309 = pneg %p308
      $region46: #{gcn2_forward.7} parent=43 // pred_check_branch
        %311 = sbr.rel (%p309) target = $region48
      $region47: #{gcn2_forward.7} parent=43 // pred_region
        %312 = vst [vmem:[#allocation2] sm:$0xff] 0.0
        %313 = vst [vmem:[#allocation2 + $0x8] sm:$0xff] 0.0
        %314 = vst [vmem:[#allocation2 + $0x10] sm:$0xff] 0.0
        %315 = vst [vmem:[#allocation2 + $0x18] sm:$0xff] 0.0
        %316 = vst [vmem:[#allocation2 + $0x20] sm:$0xff] 0.0
        %317 = vst [vmem:[#allocation2 + $0x28] sm:$0xff] 0.0
        %318 = vst [vmem:[#allocation2 + $0x30] sm:$0xff] 0.0
        %319 = vst [vmem:[#allocation2 + $0x38] sm:$0xff] 0.0
        %320 = vst [vmem:[#allocation2 + $0x40] sm:$0xff] 0.0
        %321 = vst [vmem:[#allocation2 + $0x48] sm:$0xff] 0.0
        %322 = vst [vmem:[#allocation2 + $0x50] sm:$0xff] 0.0
        %323 = vst [vmem:[#allocation2 + $0x58] sm:$0xff] 0.0
        %324 = vst [vmem:[#allocation2 + $0x60] sm:$0xff] 0.0
        %325 = vst [vmem:[#allocation2 + $0x68] sm:$0xff] 0.0
        %326 = vst [vmem:[#allocation2 + $0x70] sm:$0xff] 0.0
        %327 = vst [vmem:[#allocation2 + $0x78] sm:$0xff] 0.0
      $region48: #{gcn2_forward.7} parent=43 // pred_fallthru
        _
      %v328 = vld [vmem:[%s300] sm:$0x3]
      %v329 = vlaneseq
      %v330 = vshrl.u32 %v329, 7
      %v331 = vadd.s32 %v330, 8
      %v332 = vadd.s32 %v330, 16
      %v333 = vadd.s32 %v330, 24
      %v334 = vadd.s32 %v330, 32
      %v335 = vadd.s32 %v330, 40
      %v336 = vadd.s32 %v330, 48
      %v337 = vadd.s32 %v330, 56
      %v338 = vadd.s32 %v330, 64
      %v339 = vadd.s32 %v330, 72
      %v340 = vadd.s32 %v330, 80
      %v341 = vadd.s32 %v330, 88
      %v342 = vadd.s32 %v330, 96
      %v343 = vadd.s32 %v330, 104
      %v344 = vadd.s32 %v330, 112
      %v345 = vadd.s32 %v330, 120
      %s346 = smul.u32 %s21, 128
      %v347 = vstv %s346
      %v348 = vadd.s32 %v330, %v347
      %v349 = vadd.s32 %v331, %v347
      %v350 = vadd.s32 %v332, %v347
      %v351 = vadd.s32 %v333, %v347
      %v352 = vadd.s32 %v334, %v347
      %v353 = vadd.s32 %v335, %v347
      %v354 = vadd.s32 %v336, %v347
      %v355 = vadd.s32 %v337, %v347
      %v356 = vadd.s32 %v338, %v347
      %v357 = vadd.s32 %v339, %v347
      %v358 = vadd.s32 %v340, %v347
      %v359 = vadd.s32 %v341, %v347
      %v360 = vadd.s32 %v342, %v347
      %v361 = vadd.s32 %v343, %v347
      %v362 = vadd.s32 %v344, %v347
      %v363 = vadd.s32 %v345, %v347
      %v364 = vlaneseq
      %v365 = vshrl.u32 %v364, 7
      %v366 = vsub.s32 0, %v365
      %v367 = vrot.slane %v328, %v366
      %v368 = vlaneseq
      %v369 = vshrl.u32 %v368, 7
      %v370 = vsub.s32 1, %v369
      %v371 = vrot.slane %v328, %v370
      %vm372 = vcmp.eq.s32.totalorder %v348, %v367
      %vm373 = vcmp.eq.s32.totalorder %v348, %v371
      %vm374 = vcmp.eq.s32.totalorder %v349, %v367
      %vm375 = vcmp.eq.s32.totalorder %v349, %v371
      %vm376 = vcmp.eq.s32.totalorder %v350, %v367
      %vm377 = vcmp.eq.s32.totalorder %v350, %v371
      %vm378 = vcmp.eq.s32.totalorder %v351, %v367
      %vm379 = vcmp.eq.s32.totalorder %v351, %v371
      %vm380 = vcmp.eq.s32.totalorder %v352, %v367
      %vm381 = vcmp.eq.s32.totalorder %v352, %v371
      %vm382 = vcmp.eq.s32.totalorder %v353, %v367
      %vm383 = vcmp.eq.s32.totalorder %v353, %v371
      %vm384 = vcmp.eq.s32.totalorder %v354, %v367
      %vm385 = vcmp.eq.s32.totalorder %v354, %v371
      %vm386 = vcmp.eq.s32.totalorder %v355, %v367
      %vm387 = vcmp.eq.s32.totalorder %v355, %v371
      %vm388 = vcmp.eq.s32.totalorder %v356, %v367
      %vm389 = vcmp.eq.s32.totalorder %v356, %v371
      %vm390 = vcmp.eq.s32.totalorder %v357, %v367
      %vm391 = vcmp.eq.s32.totalorder %v357, %v371
      %vm392 = vcmp.eq.s32.totalorder %v358, %v367
      %vm393 = vcmp.eq.s32.totalorder %v358, %v371
      %vm394 = vcmp.eq.s32.totalorder %v359, %v367
      %vm395 = vcmp.eq.s32.totalorder %v359, %v371
      %vm396 = vcmp.eq.s32.totalorder %v360, %v367
      %vm397 = vcmp.eq.s32.totalorder %v360, %v371
      %vm398 = vcmp.eq.s32.totalorder %v361, %v367
      %vm399 = vcmp.eq.s32.totalorder %v361, %v371
      %vm400 = vcmp.eq.s32.totalorder %v362, %v367
      %vm401 = vcmp.eq.s32.totalorder %v362, %v371
      %vm402 = vcmp.eq.s32.totalorder %v363, %v367
      %vm403 = vcmp.eq.s32.totalorder %v363, %v371
      %v404 = vsel %vm372, 1, 0
      %v405 = vsel %vm373, 1, 0
      %v406 = vsel %vm374, 1, 0
      %v407 = vsel %vm375, 1, 0
      %v408 = vsel %vm376, 1, 0
      %v409 = vsel %vm377, 1, 0
      %v410 = vsel %vm378, 1, 0
      %v411 = vsel %vm379, 1, 0
      %v412 = vsel %vm380, 1, 0
      %v413 = vsel %vm381, 1, 0
      %v414 = vsel %vm382, 1, 0
      %v415 = vsel %vm383, 1, 0
      %v416 = vsel %vm384, 1, 0
      %v417 = vsel %vm385, 1, 0
      %v418 = vsel %vm386, 1, 0
      %v419 = vsel %vm387, 1, 0
      %v420 = vsel %vm388, 1, 0
      %v421 = vsel %vm389, 1, 0
      %v422 = vsel %vm390, 1, 0
      %v423 = vsel %vm391, 1, 0
      %v424 = vsel %vm392, 1, 0
      %v425 = vsel %vm393, 1, 0
      %v426 = vsel %vm394, 1, 0
      %v427 = vsel %vm395, 1, 0
      %v428 = vsel %vm396, 1, 0
      %v429 = vsel %vm397, 1, 0
      %v430 = vsel %vm398, 1, 0
      %v431 = vsel %vm399, 1, 0
      %v432 = vsel %vm400, 1, 0
      %v433 = vsel %vm401, 1, 0
      %v434 = vsel %vm402, 1, 0
      %v435 = vsel %vm403, 1, 0
      %v436 = vcvt.s32.f32 %v404
      %v437 = vcvt.s32.f32 %v405
      %v438 = vcvt.s32.f32 %v406
      %v439 = vcvt.s32.f32 %v407
      %v440 = vcvt.s32.f32 %v408
      %v441 = vcvt.s32.f32 %v409
      %v442 = vcvt.s32.f32 %v410
      %v443 = vcvt.s32.f32 %v411
      %v444 = vcvt.s32.f32 %v412
      %v445 = vcvt.s32.f32 %v413
      %v446 = vcvt.s32.f32 %v414
      %v447 = vcvt.s32.f32 %v415
      %v448 = vcvt.s32.f32 %v416
      %v449 = vcvt.s32.f32 %v417
      %v450 = vcvt.s32.f32 %v418
      %v451 = vcvt.s32.f32 %v419
      %v452 = vcvt.s32.f32 %v420
      %v453 = vcvt.s32.f32 %v421
      %v454 = vcvt.s32.f32 %v422
      %v455 = vcvt.s32.f32 %v423
      %v456 = vcvt.s32.f32 %v424
      %v457 = vcvt.s32.f32 %v425
      %v458 = vcvt.s32.f32 %v426
      %v459 = vcvt.s32.f32 %v427
      %v460 = vcvt.s32.f32 %v428
      %v461 = vcvt.s32.f32 %v429
      %v462 = vcvt.s32.f32 %v430
      %v463 = vcvt.s32.f32 %v431
      %v464 = vcvt.s32.f32 %v432
      %v465 = vcvt.s32.f32 %v433
      %v466 = vcvt.s32.f32 %v434
      %v467 = vcvt.s32.f32 %v435
      %v468 = vld [vmem:[#allocation2] sm:$0xff]
      %v469 = vld [vmem:[#allocation2 + $0x8] sm:$0xff]
      %v470 = vld [vmem:[#allocation2 + $0x10] sm:$0xff]
      %v471 = vld [vmem:[#allocation2 + $0x18] sm:$0xff]
      %v472 = vld [vmem:[#allocation2 + $0x20] sm:$0xff]
      %v473 = vld [vmem:[#allocation2 + $0x28] sm:$0xff]
      %v474 = vld [vmem:[#allocation2 + $0x30] sm:$0xff]
      %v475 = vld [vmem:[#allocation2 + $0x38] sm:$0xff]
      %v476 = vld [vmem:[#allocation2 + $0x40] sm:$0xff]
      %v477 = vld [vmem:[#allocation2 + $0x48] sm:$0xff]
      %v478 = vld [vmem:[#allocation2 + $0x50] sm:$0xff]
      %v479 = vld [vmem:[#allocation2 + $0x58] sm:$0xff]
      %v480 = vld [vmem:[#allocation2 + $0x60] sm:$0xff]
      %v481 = vld [vmem:[#allocation2 + $0x68] sm:$0xff]
      %v482 = vld [vmem:[#allocation2 + $0x70] sm:$0xff]
      %v483 = vld [vmem:[#allocation2 + $0x78] sm:$0xff]
      %v484 = vld [vmem:[%s295] sm:$0xff]
      %v485 = vld [vmem:[%s295 + $0x8] sm:$0xff]
      %v486 = vld [vmem:[%s295 + $0x10] sm:$0xff]
      %v487 = vld [vmem:[%s295 + $0x18] sm:$0xff]
      %v488 = vld [vmem:[%s295 + $0x20] sm:$0xff]
      %v489 = vld [vmem:[%s295 + $0x28] sm:$0xff]
      %v490 = vld [vmem:[%s295 + $0x30] sm:$0xff]
      %v491 = vld [vmem:[%s295 + $0x38] sm:$0xff]
      %v492 = vld [vmem:[%s295 + $0x40] sm:$0xff]
      %v493 = vld [vmem:[%s295 + $0x48] sm:$0xff]
      %v494 = vld [vmem:[%s295 + $0x50] sm:$0xff]
      %v495 = vld [vmem:[%s295 + $0x58] sm:$0xff]
      %v496 = vld [vmem:[%s295 + $0x60] sm:$0xff]
      %v497 = vld [vmem:[%s295 + $0x68] sm:$0xff]
      %v498 = vld [vmem:[%s295 + $0x70] sm:$0xff]
      %v499 = vld [vmem:[%s295 + $0x78] sm:$0xff]
      %v500 = vld [vmem:[%s295 + $0x80] sm:$0xff]
      %v501 = vld [vmem:[%s295 + $0x88] sm:$0xff]
      %v502 = vld [vmem:[%s295 + $0x90] sm:$0xff]
      %v503 = vld [vmem:[%s295 + $0x98] sm:$0xff]
      %v504 = vld [vmem:[%s295 + $0xa0] sm:$0xff]
      %v505 = vld [vmem:[%s295 + $0xa8] sm:$0xff]
      %v506 = vld [vmem:[%s295 + $0xb0] sm:$0xff]
      %v507 = vld [vmem:[%s295 + $0xb8] sm:$0xff]
      %v508 = vld [vmem:[%s295 + $0xc0] sm:$0xff]
      %v509 = vld [vmem:[%s295 + $0xc8] sm:$0xff]
      %v510 = vld [vmem:[%s295 + $0xd0] sm:$0xff]
      %v511 = vld [vmem:[%s295 + $0xd8] sm:$0xff]
      %v512 = vld [vmem:[%s295 + $0xe0] sm:$0xff]
      %v513 = vld [vmem:[%s295 + $0xe8] sm:$0xff]
      %v514 = vld [vmem:[%s295 + $0xf0] sm:$0xff]
      %v515 = vld [vmem:[%s295 + $0xf8] sm:$0xff]
      %516 = vmatprep.subr.mxu0 0.0
      %517 = vmatpush1.msra.mxu0 %v484
      %518 = vmatprep.subr.mxu0 0.0
      %519 = vmatpush1.msra.mxu0 %v485
      %520 = vmatprep.subr.mxu0 0.0
      %521 = vmatpush1.msra.mxu0 %v486
      %522 = vmatprep.subr.mxu0 0.0
      %523 = vmatpush1.msra.mxu0 %v487
      %524 = vmatprep.subr.mxu0 0.0
      %525 = vmatpush1.msra.mxu0 %v488
      %526 = vmatprep.subr.mxu0 0.0
      %527 = vmatpush1.msra.mxu0 %v489
      %528 = vmatprep.subr.mxu0 0.0
      %529 = vmatpush1.msra.mxu0 %v490
      %530 = vmatprep.subr.mxu0 0.0
      %531 = vmatpush1.msra.mxu0 %v491
      %532 = vmatprep.subr.mxu0 0.0
      %533 = vmatpush1.msra.mxu0 %v492
      %534 = vmatprep.subr.mxu0 0.0
      %535 = vmatpush1.msra.mxu0 %v493
      %536 = vmatprep.subr.mxu0 0.0
      %537 = vmatpush1.msra.mxu0 %v494
      %538 = vmatprep.subr.mxu0 0.0
      %539 = vmatpush1.msra.mxu0 %v495
      %540 = vmatprep.subr.mxu0 0.0
      %541 = vmatpush1.msra.mxu0 %v496
      %542 = vmatprep.subr.mxu0 0.0
      %543 = vmatpush1.msra.mxu0 %v497
      %544 = vmatprep.subr.mxu0 0.0
      %545 = vmatpush1.msra.mxu0 %v498
      %546 = vmatprep.subr.mxu0 0.0
      %547 = vmatpush1.msra.mxu0 %v499
      %548 = vmatprep.subr.mxu0 0.0
      %549 = vmatpush1.msra.mxu0 %v500
      %550 = vmatprep.subr.mxu0 0.0
      %551 = vmatpush1.msra.mxu0 %v501
      %552 = vmatprep.subr.mxu0 0.0
      %553 = vmatpush1.msra.mxu0 %v502
      %554 = vmatprep.subr.mxu0 0.0
      %555 = vmatpush1.msra.mxu0 %v503
      %556 = vmatprep.subr.mxu0 0.0
      %557 = vmatpush1.msra.mxu0 %v504
      %558 = vmatprep.subr.mxu0 0.0
      %559 = vmatpush1.msra.mxu0 %v505
      %560 = vmatprep.subr.mxu0 0.0
      %561 = vmatpush1.msra.mxu0 %v506
      %562 = vmatprep.subr.mxu0 0.0
      %563 = vmatpush1.msra.mxu0 %v507
      %564 = vmatprep.subr.mxu0 0.0
      %565 = vmatpush1.msra.mxu0 %v508
      %566 = vmatprep.subr.mxu0 0.0
      %567 = vmatpush1.msra.mxu0 %v509
      %568 = vmatprep.subr.mxu0 0.0
      %569 = vmatpush1.msra.mxu0 %v510
      %570 = vmatprep.subr.mxu0 0.0
      %571 = vmatpush1.msra.mxu0 %v511
      %572 = vmatprep.subr.mxu0 0.0
      %573 = vmatpush1.msra.mxu0 %v512
      %574 = vmatprep.subr.mxu0 0.0
      %575 = vmatpush1.msra.mxu0 %v513
      %576 = vmatprep.subr.mxu0 0.0
      %577 = vmatpush1.msra.mxu0 %v514
      %578 = vmatprep.subr.mxu0 0.0
      %579 = vmatpush1.msra.mxu0 %v515
      %580 = vmatprep.mubr.f32.mxu0 %v437
      %581 = vmatmul.mubr.f32.gmra.mrb[0].mxu0 %v436
      %v582 = vpop.f32.mrb[0].mxu0
      %v583 = vadd.f32 0.0, %v582
      %v584 = vpop.f32.mrb[0].mxu0
      %585 = vmatprep.mubr.f32.mxu0 %v439
      %586 = vmatmul.mubr.f32.gmra.mrb[0].mxu0 %v438
      %v587 = vpop.f32.mrb[0].mxu0
      %v588 = vadd.f32 0.0, %v587
      %v589 = vpop.f32.mrb[0].mxu0
      %590 = vmatprep.mubr.f32.mxu0 %v441
      %591 = vmatmul.mubr.f32.gmra.mrb[0].mxu0 %v440
      %v592 = vpop.f32.mrb[0].mxu0
      %v593 = vadd.f32 0.0, %v592
      %v594 = vpop.f32.mrb[0].mxu0
      %595 = vmatprep.mubr.f32.mxu0 %v443
      %596 = vmatmul.mubr.f32.gmra.mrb[0].mxu0 %v442
      %v597 = vpop.f32.mrb[0].mxu0
      %v598 = vadd.f32 0.0, %v597
      %v599 = vpop.f32.mrb[0].mxu0
      %600 = vmatprep.mubr.f32.mxu0 %v445
      %601 = vmatmul.mubr.f32.gmra.mrb[0].mxu0 %v444
      %v602 = vpop.f32.mrb[0].mxu0
      %v603 = vadd.f32 0.0, %v602
      %v604 = vpop.f32.mrb[0].mxu0
      %605 = vmatprep.mubr.f32.mxu0 %v447
      %606 = vmatmul.mubr.f32.gmra.mrb[0].mxu0 %v446
      %v607 = vpop.f32.mrb[0].mxu0
      %v608 = vadd.f32 0.0, %v607
      %v609 = vpop.f32.mrb[0].mxu0
      %610 = vmatprep.mubr.f32.mxu0 %v449
      %611 = vmatmul.mubr.f32.gmra.mrb[0].mxu0 %v448
      %v612 = vpop.f32.mrb[0].mxu0
      %v613 = vadd.f32 0.0, %v612
      %v614 = vpop.f32.mrb[0].mxu0
      %615 = vmatprep.mubr.f32.mxu0 %v451
      %616 = vmatmul.mubr.f32.gmra.mrb[0].mxu0 %v450
      %v617 = vpop.f32.mrb[0].mxu0
      %v618 = vadd.f32 0.0, %v617
      %v619 = vpop.f32.mrb[0].mxu0
      %620 = vmatprep.mubr.f32.mxu0 %v453
      %621 = vmatmul.mubr.f32.gmra.mrb[0].mxu0 %v452
      %v622 = vpop.f32.mrb[0].mxu0
      %v623 = vadd.f32 0.0, %v622
      %v624 = vpop.f32.mrb[0].mxu0
      %625 = vmatprep.mubr.f32.mxu0 %v455
      %626 = vmatmul.mubr.f32.gmra.mrb[0].mxu0 %v454
      %v627 = vpop.f32.mrb[0].mxu0
      %v628 = vadd.f32 0.0, %v627
      %v629 = vpop.f32.mrb[0].mxu0
      %630 = vmatprep.mubr.f32.mxu0 %v457
      %631 = vmatmul.mubr.f32.gmra.mrb[0].mxu0 %v456
      %v632 = vpop.f32.mrb[0].mxu0
      %v633 = vadd.f32 0.0, %v632
      %v634 = vpop.f32.mrb[0].mxu0
      %635 = vmatprep.mubr.f32.mxu0 %v459
      %636 = vmatmul.mubr.f32.gmra.mrb[0].mxu0 %v458
      %v637 = vpop.f32.mrb[0].mxu0
      %v638 = vadd.f32 0.0, %v637
      %v639 = vpop.f32.mrb[0].mxu0
      %640 = vmatprep.mubr.f32.mxu0 %v461
      %641 = vmatmul.mubr.f32.gmra.mrb[0].mxu0 %v460
      %v642 = vpop.f32.mrb[0].mxu0
      %v643 = vadd.f32 0.0, %v642
      %v644 = vpop.f32.mrb[0].mxu0
      %645 = vmatprep.mubr.f32.mxu0 %v463
      %646 = vmatmul.mubr.f32.gmra.mrb[0].mxu0 %v462
      %v647 = vpop.f32.mrb[0].mxu0
      %v648 = vadd.f32 0.0, %v647
      %v649 = vpop.f32.mrb[0].mxu0
      %650 = vmatprep.mubr.f32.mxu0 %v465
      %651 = vmatmul.mubr.f32.gmra.mrb[0].mxu0 %v464
      %v652 = vpop.f32.mrb[0].mxu0
      %v653 = vadd.f32 0.0, %v652
      %v654 = vpop.f32.mrb[0].mxu0
      %655 = vmatprep.mubr.f32.mxu0 %v467
      %656 = vmatmul.mubr.f32.gmra.mrb[0].mxu0 %v466
      %v657 = vpop.f32.mrb[0].mxu0
      %v658 = vadd.f32 0.0, %v657
      %v659 = vpop.f32.mrb[0].mxu0
      %660 = vdwg.mxu0
      %v661 = vadd.f32 %v468, %v583
      %v662 = vadd.f32 %v469, %v588
      %v663 = vadd.f32 %v470, %v593
      %v664 = vadd.f32 %v471, %v598
      %v665 = vadd.f32 %v472, %v603
      %v666 = vadd.f32 %v473, %v608
      %v667 = vadd.f32 %v474, %v613
      %v668 = vadd.f32 %v475, %v618
      %v669 = vadd.f32 %v476, %v623
      %v670 = vadd.f32 %v477, %v628
      %v671 = vadd.f32 %v478, %v633
      %v672 = vadd.f32 %v479, %v638
      %v673 = vadd.f32 %v480, %v643
      %v674 = vadd.f32 %v481, %v648
      %v675 = vadd.f32 %v482, %v653
      %v676 = vadd.f32 %v483, %v658
      %677 = vst [vmem:[#allocation2] sm:$0xff] %v661
      %678 = vst [vmem:[#allocation2 + $0x8] sm:$0xff] %v662
      %679 = vst [vmem:[#allocation2 + $0x10] sm:$0xff] %v663
      %680 = vst [vmem:[#allocation2 + $0x18] sm:$0xff] %v664
      %681 = vst [vmem:[#allocation2 + $0x20] sm:$0xff] %v665
      %682 = vst [vmem:[#allocation2 + $0x28] sm:$0xff] %v666
      %683 = vst [vmem:[#allocation2 + $0x30] sm:$0xff] %v667
      %684 = vst [vmem:[#allocation2 + $0x38] sm:$0xff] %v668
      %685 = vst [vmem:[#allocation2 + $0x40] sm:$0xff] %v669
      %686 = vst [vmem:[#allocation2 + $0x48] sm:$0xff] %v670
      %687 = vst [vmem:[#allocation2 + $0x50] sm:$0xff] %v671
      %688 = vst [vmem:[#allocation2 + $0x58] sm:$0xff] %v672
      %689 = vst [vmem:[#allocation2 + $0x60] sm:$0xff] %v673
      %690 = vst [vmem:[#allocation2 + $0x68] sm:$0xff] %v674
      %691 = vst [vmem:[#allocation2 + $0x70] sm:$0xff] %v675
      %692 = vst [vmem:[#allocation2 + $0x78] sm:$0xff] %v676
      %p693 = scmp.eq.s32.totalorder %s22, 2
      // Predicated region
      $region49: #{gcn2_forward.7} parent=43 // pred_check
        %p694 = pneg %p693
      $region50: #{gcn2_forward.7} parent=43 // pred_check_branch
        %696 = sbr.rel (%p694) target = $region52
      $region51: #{gcn2_forward.7} parent=43 // pred_region
        %v697 = vld [vmem:[%s289] sm:$0xff]
        %v698 = vld [vmem:[%s289 + $0x8] sm:$0xff]
        %v699 = vld [vmem:[%s289 + $0x10] sm:$0xff]
        %v700 = vld [vmem:[%s289 + $0x18] sm:$0xff]
        %v701 = vld [vmem:[%s289 + $0x20] sm:$0xff]
        %v702 = vld [vmem:[%s289 + $0x28] sm:$0xff]
        %v703 = vld [vmem:[%s289 + $0x30] sm:$0xff]
        %v704 = vld [vmem:[%s289 + $0x38] sm:$0xff]
        %v705 = vld [vmem:[%s289 + $0x40] sm:$0xff]
        %v706 = vld [vmem:[%s289 + $0x48] sm:$0xff]
        %v707 = vld [vmem:[%s289 + $0x50] sm:$0xff]
        %v708 = vld [vmem:[%s289 + $0x58] sm:$0xff]
        %v709 = vld [vmem:[%s289 + $0x60] sm:$0xff]
        %v710 = vld [vmem:[%s289 + $0x68] sm:$0xff]
        %v711 = vld [vmem:[%s289 + $0x70] sm:$0xff]
        %v712 = vld [vmem:[%s289 + $0x78] sm:$0xff]
        %v713 = vld [vmem:[%s3] sm:$0xff]
        %v714 = vld [vmem:[%s3 + $0x8] sm:$0xff]
        %v715 = vld [vmem:[%s3 + $0x10] sm:$0xff]
        %v716 = vld [vmem:[%s3 + $0x18] sm:$0xff]
        %v717 = vld [vmem:[%s3 + $0x20] sm:$0xff]
        %v718 = vld [vmem:[%s3 + $0x28] sm:$0xff]
        %v719 = vld [vmem:[%s3 + $0x30] sm:$0xff]
        %v720 = vld [vmem:[%s3 + $0x38] sm:$0xff]
        %v721 = vld [vmem:[%s3 + $0x40] sm:$0xff]
        %v722 = vld [vmem:[%s3 + $0x48] sm:$0xff]
        %v723 = vld [vmem:[%s3 + $0x50] sm:$0xff]
        %v724 = vld [vmem:[%s3 + $0x58] sm:$0xff]
        %v725 = vld [vmem:[%s3 + $0x60] sm:$0xff]
        %v726 = vld [vmem:[%s3 + $0x68] sm:$0xff]
        %v727 = vld [vmem:[%s3 + $0x70] sm:$0xff]
        %v728 = vld [vmem:[%s3 + $0x78] sm:$0xff]
        %v729 = vld [vmem:[#allocation2] sm:$0xff]
        %v730 = vld [vmem:[#allocation2 + $0x8] sm:$0xff]
        %v731 = vld [vmem:[#allocation2 + $0x10] sm:$0xff]
        %v732 = vld [vmem:[#allocation2 + $0x18] sm:$0xff]
        %v733 = vld [vmem:[#allocation2 + $0x20] sm:$0xff]
        %v734 = vld [vmem:[#allocation2 + $0x28] sm:$0xff]
        %v735 = vld [vmem:[#allocation2 + $0x30] sm:$0xff]
        %v736 = vld [vmem:[#allocation2 + $0x38] sm:$0xff]
        %v737 = vld [vmem:[#allocation2 + $0x40] sm:$0xff]
        %v738 = vld [vmem:[#allocation2 + $0x48] sm:$0xff]
        %v739 = vld [vmem:[#allocation2 + $0x50] sm:$0xff]
        %v740 = vld [vmem:[#allocation2 + $0x58] sm:$0xff]
        %v741 = vld [vmem:[#allocation2 + $0x60] sm:$0xff]
        %v742 = vld [vmem:[#allocation2 + $0x68] sm:$0xff]
        %v743 = vld [vmem:[#allocation2 + $0x70] sm:$0xff]
        %v744 = vld [vmem:[#allocation2 + $0x78] sm:$0xff]
        %v745 = vld [vmem:[%s4] sm:$0xff]
        %v746 = vld [vmem:[%s4 + $0x8] sm:$0xff]
        %v747 = vld [vmem:[%s4 + $0x10] sm:$0xff]
        %v748 = vld [vmem:[%s4 + $0x18] sm:$0xff]
        %v749 = vld [vmem:[%s4 + $0x20] sm:$0xff]
        %v750 = vld [vmem:[%s4 + $0x28] sm:$0xff]
        %v751 = vld [vmem:[%s4 + $0x30] sm:$0xff]
        %v752 = vld [vmem:[%s4 + $0x38] sm:$0xff]
        %v753 = vld [vmem:[%s4 + $0x40] sm:$0xff]
        %v754 = vld [vmem:[%s4 + $0x48] sm:$0xff]
        %v755 = vld [vmem:[%s4 + $0x50] sm:$0xff]
        %v756 = vld [vmem:[%s4 + $0x58] sm:$0xff]
        %v757 = vld [vmem:[%s4 + $0x60] sm:$0xff]
        %v758 = vld [vmem:[%s4 + $0x68] sm:$0xff]
        %v759 = vld [vmem:[%s4 + $0x70] sm:$0xff]
        %v760 = vld [vmem:[%s4 + $0x78] sm:$0xff]
        %761 = vmatprep.subr.mxu0 0.0
        %762 = vmatpush1.msra.mxu0 %v745
        %763 = vmatprep.subr.mxu0 0.0
        %764 = vmatpush1.msra.mxu0 %v746
        %765 = vmatprep.subr.mxu0 0.0
        %766 = vmatpush1.msra.mxu0 %v747
        %767 = vmatprep.subr.mxu0 0.0
        %768 = vmatpush1.msra.mxu0 %v748
        %769 = vmatprep.subr.mxu0 0.0
        %770 = vmatpush1.msra.mxu0 %v749
        %771 = vmatprep.subr.mxu0 0.0
        %772 = vmatpush1.msra.mxu0 %v750
        %773 = vmatprep.subr.mxu0 0.0
        %774 = vmatpush1.msra.mxu0 %v751
        %775 = vmatprep.subr.mxu0 0.0
        %776 = vmatpush1.msra.mxu0 %v752
        %777 = vmatprep.subr.mxu0 0.0
        %778 = vmatpush1.msra.mxu0 %v753
        %779 = vmatprep.subr.mxu0 0.0
        %780 = vmatpush1.msra.mxu0 %v754
        %781 = vmatprep.subr.mxu0 0.0
        %782 = vmatpush1.msra.mxu0 %v755
        %783 = vmatprep.subr.mxu0 0.0
        %784 = vmatpush1.msra.mxu0 %v756
        %785 = vmatprep.subr.mxu0 0.0
        %786 = vmatpush1.msra.mxu0 %v757
        %787 = vmatprep.subr.mxu0 0.0
        %788 = vmatpush1.msra.mxu0 %v758
        %789 = vmatprep.subr.mxu0 0.0
        %790 = vmatpush1.msra.mxu0 %v759
        %791 = vmatprep.subr.mxu0 0.0
        %792 = vmatpush1.msra.mxu0 %v760
        %793 = vmatprep.subr.mxu0 0.0
        %794 = vmatpush1.msra.mxu0 0.0
        %795 = vmatprep.subr.mxu0 0.0
        %796 = vmatpush1.msra.mxu0 0.0
        %797 = vmatprep.subr.mxu0 0.0
        %798 = vmatpush1.msra.mxu0 0.0
        %799 = vmatprep.subr.mxu0 0.0
        %800 = vmatpush1.msra.mxu0 0.0
        %801 = vmatprep.subr.mxu0 0.0
        %802 = vmatpush1.msra.mxu0 0.0
        %803 = vmatprep.subr.mxu0 0.0
        %804 = vmatpush1.msra.mxu0 0.0
        %805 = vmatprep.subr.mxu0 0.0
        %806 = vmatpush1.msra.mxu0 0.0
        %807 = vmatprep.subr.mxu0 0.0
        %808 = vmatpush1.msra.mxu0 0.0
        %809 = vmatprep.subr.mxu0 0.0
        %810 = vmatpush1.msra.mxu0 0.0
        %811 = vmatprep.subr.mxu0 0.0
        %812 = vmatpush1.msra.mxu0 0.0
        %813 = vmatprep.subr.mxu0 0.0
        %814 = vmatpush1.msra.mxu0 0.0
        %815 = vmatprep.subr.mxu0 0.0
        %816 = vmatpush1.msra.mxu0 0.0
        %817 = vmatprep.subr.mxu0 0.0
        %818 = vmatpush1.msra.mxu0 0.0
        %819 = vmatprep.subr.mxu0 0.0
        %820 = vmatpush1.msra.mxu0 0.0
        %821 = vmatprep.subr.mxu0 0.0
        %822 = vmatpush1.msra.mxu0 0.0
        %823 = vmatprep.subr.mxu0 0.0
        %824 = vmatpush1.msra.mxu0 0.0
        %825 = vmatprep.mubr.f32.mxu0 0.0
        %826 = vmatmul.mubr.f32.gmra.mrb[0].mxu0 %v729
        %v827 = vpop.f32.mrb[0].mxu0
        %v828 = vadd.f32 0.0, %v827
        %v829 = vpop.f32.mrb[0].mxu0
        %830 = vmatprep.mubr.f32.mxu0 0.0
        %831 = vmatmul.mubr.f32.gmra.mrb[0].mxu0 %v730
        %v832 = vpop.f32.mrb[0].mxu0
        %v833 = vadd.f32 0.0, %v832
        %v834 = vpop.f32.mrb[0].mxu0
        %835 = vmatprep.mubr.f32.mxu0 0.0
        %836 = vmatmul.mubr.f32.gmra.mrb[0].mxu0 %v731
        %v837 = vpop.f32.mrb[0].mxu0
        %v838 = vadd.f32 0.0, %v837
        %v839 = vpop.f32.mrb[0].mxu0
        %840 = vmatprep.mubr.f32.mxu0 0.0
        %841 = vmatmul.mubr.f32.gmra.mrb[0].mxu0 %v732
        %v842 = vpop.f32.mrb[0].mxu0
        %v843 = vadd.f32 0.0, %v842
        %v844 = vpop.f32.mrb[0].mxu0
        %845 = vmatprep.mubr.f32.mxu0 0.0
        %846 = vmatmul.mubr.f32.gmra.mrb[0].mxu0 %v733
        %v847 = vpop.f32.mrb[0].mxu0
        %v848 = vadd.f32 0.0, %v847
        %v849 = vpop.f32.mrb[0].mxu0
        %850 = vmatprep.mubr.f32.mxu0 0.0
        %851 = vmatmul.mubr.f32.gmra.mrb[0].mxu0 %v734
        %v852 = vpop.f32.mrb[0].mxu0
        %v853 = vadd.f32 0.0, %v852
        %v854 = vpop.f32.mrb[0].mxu0
        %855 = vmatprep.mubr.f32.mxu0 0.0
        %856 = vmatmul.mubr.f32.gmra.mrb[0].mxu0 %v735
        %v857 = vpop.f32.mrb[0].mxu0
        %v858 = vadd.f32 0.0, %v857
        %v859 = vpop.f32.mrb[0].mxu0
        %860 = vmatprep.mubr.f32.mxu0 0.0
        %861 = vmatmul.mubr.f32.gmra.mrb[0].mxu0 %v736
        %v862 = vpop.f32.mrb[0].mxu0
        %v863 = vadd.f32 0.0, %v862
        %v864 = vpop.f32.mrb[0].mxu0
        %865 = vmatprep.mubr.f32.mxu0 0.0
        %866 = vmatmul.mubr.f32.gmra.mrb[0].mxu0 %v737
        %v867 = vpop.f32.mrb[0].mxu0
        %v868 = vadd.f32 0.0, %v867
        %v869 = vpop.f32.mrb[0].mxu0
        %870 = vmatprep.mubr.f32.mxu0 0.0
        %871 = vmatmul.mubr.f32.gmra.mrb[0].mxu0 %v738
        %v872 = vpop.f32.mrb[0].mxu0
        %v873 = vadd.f32 0.0, %v872
        %v874 = vpop.f32.mrb[0].mxu0
        %875 = vmatprep.mubr.f32.mxu0 0.0
        %876 = vmatmul.mubr.f32.gmra.mrb[0].mxu0 %v739
        %v877 = vpop.f32.mrb[0].mxu0
        %v878 = vadd.f32 0.0, %v877
        %v879 = vpop.f32.mrb[0].mxu0
        %880 = vmatprep.mubr.f32.mxu0 0.0
        %881 = vmatmul.mubr.f32.gmra.mrb[0].mxu0 %v740
        %v882 = vpop.f32.mrb[0].mxu0
        %v883 = vadd.f32 0.0, %v882
        %v884 = vpop.f32.mrb[0].mxu0
        %885 = vmatprep.mubr.f32.mxu0 0.0
        %886 = vmatmul.mubr.f32.gmra.mrb[0].mxu0 %v741
        %v887 = vpop.f32.mrb[0].mxu0
        %v888 = vadd.f32 0.0, %v887
        %v889 = vpop.f32.mrb[0].mxu0
        %890 = vmatprep.mubr.f32.mxu0 0.0
        %891 = vmatmul.mubr.f32.gmra.mrb[0].mxu0 %v742
        %v892 = vpop.f32.mrb[0].mxu0
        %v893 = vadd.f32 0.0, %v892
        %v894 = vpop.f32.mrb[0].mxu0
        %895 = vmatprep.mubr.f32.mxu0 0.0
        %896 = vmatmul.mubr.f32.gmra.mrb[0].mxu0 %v743
        %v897 = vpop.f32.mrb[0].mxu0
        %v898 = vadd.f32 0.0, %v897
        %v899 = vpop.f32.mrb[0].mxu0
        %900 = vmatprep.mubr.f32.mxu0 0.0
        %901 = vmatmul.mubr.f32.gmra.mrb[0].mxu0 %v744
        %v902 = vpop.f32.mrb[0].mxu0
        %v903 = vadd.f32 0.0, %v902
        %v904 = vpop.f32.mrb[0].mxu0
        %905 = vdwg.mxu0
        %906 = vmatprep.subr.mxu0 0.0
        %907 = vmatpush1.msra.mxu0 %v713
        %908 = vmatprep.subr.mxu0 0.0
        %909 = vmatpush1.msra.mxu0 %v714
        %910 = vmatprep.subr.mxu0 0.0
        %911 = vmatpush1.msra.mxu0 %v715
        %912 = vmatprep.subr.mxu0 0.0
        %913 = vmatpush1.msra.mxu0 %v716
        %914 = vmatprep.subr.mxu0 0.0
        %915 = vmatpush1.msra.mxu0 %v717
        %916 = vmatprep.subr.mxu0 0.0
        %917 = vmatpush1.msra.mxu0 %v718
        %918 = vmatprep.subr.mxu0 0.0
        %919 = vmatpush1.msra.mxu0 %v719
        %920 = vmatprep.subr.mxu0 0.0
        %921 = vmatpush1.msra.mxu0 %v720
        %922 = vmatprep.subr.mxu0 0.0
        %923 = vmatpush1.msra.mxu0 %v721
        %924 = vmatprep.subr.mxu0 0.0
        %925 = vmatpush1.msra.mxu0 %v722
        %926 = vmatprep.subr.mxu0 0.0
        %927 = vmatpush1.msra.mxu0 %v723
        %928 = vmatprep.subr.mxu0 0.0
        %929 = vmatpush1.msra.mxu0 %v724
        %930 = vmatprep.subr.mxu0 0.0
        %931 = vmatpush1.msra.mxu0 %v725
        %932 = vmatprep.subr.mxu0 0.0
        %933 = vmatpush1.msra.mxu0 %v726
        %934 = vmatprep.subr.mxu0 0.0
        %935 = vmatpush1.msra.mxu0 %v727
        %936 = vmatprep.subr.mxu0 0.0
        %937 = vmatpush1.msra.mxu0 %v728
        %938 = vmatprep.subr.mxu0 0.0
        %939 = vmatpush1.msra.mxu0 0.0
        %940 = vmatprep.subr.mxu0 0.0
        %941 = vmatpush1.msra.mxu0 0.0
        %942 = vmatprep.subr.mxu0 0.0
        %943 = vmatpush1.msra.mxu0 0.0
        %944 = vmatprep.subr.mxu0 0.0
        %945 = vmatpush1.msra.mxu0 0.0
        %946 = vmatprep.subr.mxu0 0.0
        %947 = vmatpush1.msra.mxu0 0.0
        %948 = vmatprep.subr.mxu0 0.0
        %949 = vmatpush1.msra.mxu0 0.0
        %950 = vmatprep.subr.mxu0 0.0
        %951 = vmatpush1.msra.mxu0 0.0
        %952 = vmatprep.subr.mxu0 0.0
        %953 = vmatpush1.msra.mxu0 0.0
        %954 = vmatprep.subr.mxu0 0.0
        %955 = vmatpush1.msra.mxu0 0.0
        %956 = vmatprep.subr.mxu0 0.0
        %957 = vmatpush1.msra.mxu0 0.0
        %958 = vmatprep.subr.mxu0 0.0
        %959 = vmatpush1.msra.mxu0 0.0
        %960 = vmatprep.subr.mxu0 0.0
        %961 = vmatpush1.msra.mxu0 0.0
        %962 = vmatprep.subr.mxu0 0.0
        %963 = vmatpush1.msra.mxu0 0.0
        %964 = vmatprep.subr.mxu0 0.0
        %965 = vmatpush1.msra.mxu0 0.0
        %966 = vmatprep.subr.mxu0 0.0
        %967 = vmatpush1.msra.mxu0 0.0
        %968 = vmatprep.subr.mxu0 0.0
        %969 = vmatpush1.msra.mxu0 0.0
        %970 = vmatprep.mubr.f32.mxu0 0.0
        %971 = vmatmul.mubr.f32.gmra.mrb[0].mxu0 %v697
        %v972 = vpop.f32.mrb[0].mxu0
        %v973 = vadd.f32 %v828, %v972
        %v974 = vpop.f32.mrb[0].mxu0
        %975 = vmatprep.mubr.f32.mxu0 0.0
        %976 = vmatmul.mubr.f32.gmra.mrb[0].mxu0 %v698
        %v977 = vpop.f32.mrb[0].mxu0
        %v978 = vadd.f32 %v833, %v977
        %v979 = vpop.f32.mrb[0].mxu0
        %980 = vmatprep.mubr.f32.mxu0 0.0
        %981 = vmatmul.mubr.f32.gmra.mrb[0].mxu0 %v699
        %v982 = vpop.f32.mrb[0].mxu0
        %v983 = vadd.f32 %v838, %v982
        %v984 = vpop.f32.mrb[0].mxu0
        %985 = vmatprep.mubr.f32.mxu0 0.0
        %986 = vmatmul.mubr.f32.gmra.mrb[0].mxu0 %v700
        %v987 = vpop.f32.mrb[0].mxu0
        %v988 = vadd.f32 %v843, %v987
        %v989 = vpop.f32.mrb[0].mxu0
        %990 = vmatprep.mubr.f32.mxu0 0.0
        %991 = vmatmul.mubr.f32.gmra.mrb[0].mxu0 %v701
        %v992 = vpop.f32.mrb[0].mxu0
        %v993 = vadd.f32 %v848, %v992
        %v994 = vpop.f32.mrb[0].mxu0
        %995 = vmatprep.mubr.f32.mxu0 0.0
        %996 = vmatmul.mubr.f32.gmra.mrb[0].mxu0 %v702
        %v997 = vpop.f32.mrb[0].mxu0
        %v998 = vadd.f32 %v853, %v997
        %v999 = vpop.f32.mrb[0].mxu0
        %1000 = vmatprep.mubr.f32.mxu0 0.0
        %1001 = vmatmul.mubr.f32.gmra.mrb[0].mxu0 %v703
        %v1002 = vpop.f32.mrb[0].mxu0
        %v1003 = vadd.f32 %v858, %v1002
        %v1004 = vpop.f32.mrb[0].mxu0
        %1005 = vmatprep.mubr.f32.mxu0 0.0
        %1006 = vmatmul.mubr.f32.gmra.mrb[0].mxu0 %v704
        %v1007 = vpop.f32.mrb[0].mxu0
        %v1008 = vadd.f32 %v863, %v1007
        %v1009 = vpop.f32.mrb[0].mxu0
        %1010 = vmatprep.mubr.f32.mxu0 0.0
        %1011 = vmatmul.mubr.f32.gmra.mrb[0].mxu0 %v705
        %v1012 = vpop.f32.mrb[0].mxu0
        %v1013 = vadd.f32 %v868, %v1012
        %v1014 = vpop.f32.mrb[0].mxu0
        %1015 = vmatprep.mubr.f32.mxu0 0.0
        %1016 = vmatmul.mubr.f32.gmra.mrb[0].mxu0 %v706
        %v1017 = vpop.f32.mrb[0].mxu0
        %v1018 = vadd.f32 %v873, %v1017
        %v1019 = vpop.f32.mrb[0].mxu0
        %1020 = vmatprep.mubr.f32.mxu0 0.0
        %1021 = vmatmul.mubr.f32.gmra.mrb[0].mxu0 %v707
        %v1022 = vpop.f32.mrb[0].mxu0
        %v1023 = vadd.f32 %v878, %v1022
        %v1024 = vpop.f32.mrb[0].mxu0
        %1025 = vmatprep.mubr.f32.mxu0 0.0
        %1026 = vmatmul.mubr.f32.gmra.mrb[0].mxu0 %v708
        %v1027 = vpop.f32.mrb[0].mxu0
        %v1028 = vadd.f32 %v883, %v1027
        %v1029 = vpop.f32.mrb[0].mxu0
        %1030 = vmatprep.mubr.f32.mxu0 0.0
        %1031 = vmatmul.mubr.f32.gmra.mrb[0].mxu0 %v709
        %v1032 = vpop.f32.mrb[0].mxu0
        %v1033 = vadd.f32 %v888, %v1032
        %v1034 = vpop.f32.mrb[0].mxu0
        %1035 = vmatprep.mubr.f32.mxu0 0.0
        %1036 = vmatmul.mubr.f32.gmra.mrb[0].mxu0 %v710
        %v1037 = vpop.f32.mrb[0].mxu0
        %v1038 = vadd.f32 %v893, %v1037
        %v1039 = vpop.f32.mrb[0].mxu0
        %1040 = vmatprep.mubr.f32.mxu0 0.0
        %1041 = vmatmul.mubr.f32.gmra.mrb[0].mxu0 %v711
        %v1042 = vpop.f32.mrb[0].mxu0
        %v1043 = vadd.f32 %v898, %v1042
        %v1044 = vpop.f32.mrb[0].mxu0
        %1045 = vmatprep.mubr.f32.mxu0 0.0
        %1046 = vmatmul.mubr.f32.gmra.mrb[0].mxu0 %v712
        %v1047 = vpop.f32.mrb[0].mxu0
        %v1048 = vadd.f32 %v903, %v1047
        %v1049 = vpop.f32.mrb[0].mxu0
        %1050 = vdwg.mxu0
        %v1051 = vld [vmem:[%s5] sm:$0x1]
        %v1053 = vlaneseq
        %v1054 = vshrl.u32 %v1053, 7
        %v1055 = vsub.s32 0, %v1054
        %v1056 = vrot.slane %v1051, %v1055
        %v1058 = vadd.f32 %v973, %v1056
        %v1059 = vadd.f32 %v978, %v1056
        %v1060 = vadd.f32 %v983, %v1056
        %v1061 = vadd.f32 %v988, %v1056
        %v1062 = vadd.f32 %v993, %v1056
        %v1063 = vadd.f32 %v998, %v1056
        %v1064 = vadd.f32 %v1003, %v1056
        %v1065 = vadd.f32 %v1008, %v1056
        %v1066 = vadd.f32 %v1013, %v1056
        %v1067 = vadd.f32 %v1018, %v1056
        %v1068 = vadd.f32 %v1023, %v1056
        %v1069 = vadd.f32 %v1028, %v1056
        %v1070 = vadd.f32 %v1033, %v1056
        %v1071 = vadd.f32 %v1038, %v1056
        %v1072 = vadd.f32 %v1043, %v1056
        %v1073 = vadd.f32 %v1048, %v1056
        %v1074 = vmax.f32 %v1058, 0.0
        %v1075 = vmax.f32 %v1059, 0.0
        %v1076 = vmax.f32 %v1060, 0.0
        %v1077 = vmax.f32 %v1061, 0.0
        %v1078 = vmax.f32 %v1062, 0.0
        %v1079 = vmax.f32 %v1063, 0.0
        %v1080 = vmax.f32 %v1064, 0.0
        %v1081 = vmax.f32 %v1065, 0.0
        %v1082 = vmax.f32 %v1066, 0.0
        %v1083 = vmax.f32 %v1067, 0.0
        %v1084 = vmax.f32 %v1068, 0.0
        %v1085 = vmax.f32 %v1069, 0.0
        %v1086 = vmax.f32 %v1070, 0.0
        %v1087 = vmax.f32 %v1071, 0.0
        %v1088 = vmax.f32 %v1072, 0.0
        %v1089 = vmax.f32 %v1073, 0.0
        %1090 = vst [vmem:[%s306] sm:$0xff] %v1074
        %1091 = vst [vmem:[%s306 + $0x8] sm:$0xff] %v1075
        %1092 = vst [vmem:[%s306 + $0x10] sm:$0xff] %v1076
        %1093 = vst [vmem:[%s306 + $0x18] sm:$0xff] %v1077
        %1094 = vst [vmem:[%s306 + $0x20] sm:$0xff] %v1078
        %1095 = vst [vmem:[%s306 + $0x28] sm:$0xff] %v1079
        %1096 = vst [vmem:[%s306 + $0x30] sm:$0xff] %v1080
        %1097 = vst [vmem:[%s306 + $0x38] sm:$0xff] %v1081
        %1098 = vst [vmem:[%s306 + $0x40] sm:$0xff] %v1082
        %1099 = vst [vmem:[%s306 + $0x48] sm:$0xff] %v1083
        %1100 = vst [vmem:[%s306 + $0x50] sm:$0xff] %v1084
        %1101 = vst [vmem:[%s306 + $0x58] sm:$0xff] %v1085
        %1102 = vst [vmem:[%s306 + $0x60] sm:$0xff] %v1086
        %1103 = vst [vmem:[%s306 + $0x68] sm:$0xff] %v1087
        %1104 = vst [vmem:[%s306 + $0x70] sm:$0xff] %v1088
        %1105 = vst [vmem:[%s306 + $0x78] sm:$0xff] %v1089
      $region52: #{gcn2_forward.7} parent=43 // pred_fallthru
        _
      %s1106 = smul.u32 16, %s21
      %p1107 = scmp.lt.s32.totalorder %s1106, 31
      %s1108 = scalar_select %p1107, %s1106, 31
      %s1109 = smul.addr %s1108, 8
      %s1110 = scalar_lea.vmem %s6, %s1109
      // Predicated region
      $region53: #{gcn2_forward.7} parent=43 // pred_check
        %p1111 = pneg %p188
      $region54: #{gcn2_forward.7} parent=43 // pred_check_branch
        %1113 = sbr.rel (%p1111) target = $region56
      $region55: #{gcn2_forward.7} parent=43 // pred_region
        %s1114 = smul.u32 16, %s21
      $region56: #{gcn2_forward.7} parent=43 // pred_fallthru
        _
    $region44: #{gcn2_forward.7} parent=5 // pred_fallthru
      _
    %p1115 = scmp.le.s32.totalorder 2, %s12
    // Predicated region
    $region57: #{gcn2_forward.7} parent=5 // pred_check
      %p1116 = pneg %p1115
    $region58: #{gcn2_forward.7} parent=5 // pred_check_branch
      %1118 = sbr.rel (%p1116) target = $region60
    $region59: #{gcn2_forward.7} parent=5 // pred_region
      %s1119 = ssub.s32 %s12, 2
      // Predicated region
      $region61: #{gcn2_forward.7} parent=59 // pred_check
        %p1120 = pneg %p194
      $region62: #{gcn2_forward.7} parent=59 // pred_check_branch
        %1122 = sbr.rel (%p1120) target = $region64
      $region63: #{gcn2_forward.7} parent=59 // pred_region
        %s1123 = smul.u32 16, %s23
        %p1124 = scmp.lt.s32.totalorder %s1123, 31
        %s1125 = scalar_select %p1124, %s1123, 31
        %s1126 = smul.addr %s1125, 8
        %s1127 = scalar_lea.vmem %s6, %s1126
      $region64: #{gcn2_forward.7} parent=59 // pred_fallthru
        _
    $region60: #{gcn2_forward.7} parent=5 // pred_fallthru
      _
  $region6: #{gcn2_forward.7} parent=0 // loop_footer
    %s16 = sadd.s32 1, %s12
  $region7: #{gcn2_forward.7} parent=0 // loop_footer_branch
    %11 = sbr.rel target = $region3
  $region8: #{gcn2_forward.7} parent=0 // loop_exit
    _

// kernel: gcn2_forward.6
$region0: #{gcn2_forward.6}
  #allocation0 [shape = 'u32[]', space=smem, size = 0x4, offset = 0x4, fixed_abs, tag = 'smem constant byte address 0x4 - core index']
  #allocation1 [shape = 'u32[144,128]{1,0:T(1,128)}', space=vmem, size = 0x12000, scoped, tag = 'internal scratch']
  %s0 = inlined_call_operand.vmem [shape: f32[256,128], index: 0, kind: input, shape index: {}]
  %s1 = inlined_call_operand.vmem [shape: f32[768,128], index: 1, kind: input, shape index: {}]
  %s2 = inlined_call_operand.vmem [shape: s32[768,1], index: 2, kind: input, shape index: {}]
  %s3 = inlined_call_operand.vmem [shape: f32[128,128], index: 3, kind: input, shape index: {}]
  %s4 = inlined_call_operand.vmem [shape: f32[128,128], index: 4, kind: input, shape index: {}]
  %s5 = inlined_call_operand.vmem [shape: f32[1,128], index: 5, kind: input, shape index: {}]
  %s6 = inlined_call_operand.vmem [shape: f32[768,128], index: 6, kind: output, shape index: {}]
  %s7 = sld [smem:[#allocation0]]
  $region57: #{gcn2_forward.6} parent=0
    _
  %s9 = ssub.s32 1, %s7
  %s10 = scalar_select 0, %s9, %s7
  loop: start=0, step=1, limit=5
  $region2: #{gcn2_forward.6} parent=0 // loop_pre_header
    _
  $region3: #{gcn2_forward.6} parent=0 // loop_header
    %s12 = sphi 0, %s16
    %p13 = scmp.ge.s32.totalorder %s12, 5
    %s20 = sphi 0, %s20
    %s22 = sphi 0, %s20
    %s23 = sphi 0, %s22
    %s37 = sphi 0, %s23
    %s43 = sphi 0, %s45
    %s46 = sphi 0, %s43
    %s47 = sphi 0, %s46
    %s63 = sphi 0, %s47
    %s69 = sphi 0, %s71
    %s72 = sphi 0, %s69
    %s73 = sphi 0, %s72
    %s89 = sphi 0, %s73
    %s93 = sphi 0, %s93
    %s95 = sphi 0, %s93
    %s96 = sphi 0, %s95
    %s110 = sphi 0, %s96
    %s114 = sphi 0, %s114
    %s116 = sphi 0, %s114
    %s117 = sphi 0, %s116
    %s131 = sphi 0, %s117
    %s135 = sphi 0, %s135
    %s137 = sphi 0, %s135
    %s138 = sphi 0, %s137
    %s152 = sphi 0, %s138
    %s158 = sphi 0, %s160
    %s161 = sphi 0, %s158
    %s162 = sphi 0, %s161
    %s178 = sphi 0, %s162
  $region4: #{gcn2_forward.6} parent=0 // loop_header_branch
    %15 = sbr.rel (%p13) target = $region8
  $region5: #{gcn2_forward.6} parent=0 // loop_body
    %s17 = ssub.s32 %s12, 1
    %s18 = ssub.s32 %s12, 2
    %s19 = sadd.s32 %s12, 1
    %s21 = sadd.s32 %s20, 1
    %p24 = scmp.eq.s32.totalorder %s12, 2
    %p25 = scmp.ne.s32.totalorder %s20, %s22
    %p26 = scmp.eq.s32.totalorder %s12, 0
    %p27 = por %p25, %p26
    %p28 = scmp.ne.s32.totalorder %s20, %s22
    %p29 = scmp.eq.s32.totalorder %s17, 2
    %p30 = por %p28, %p29
    %p31 = scmp.ne.s32.totalorder %s22, %s23
    %p32 = scmp.eq.s32.totalorder %s17, 0
    %p33 = por %p31, %p32
    %p34 = scmp.ne.s32.totalorder %s22, %s23
    %p35 = scmp.eq.s32.totalorder %s18, 2
    %p36 = por %p34, %p35
    %p38 = scmp.ne.s32.totalorder %s23, %s37
    %p39 = scmp.eq.s32.totalorder %s18, 0
    %p40 = por %p38, %p39
    %s41 = ssub.s32 %s12, %s19
    %p42 = scmp.eq.s32.totalorder %s41, 0
    %s44 = sadd.s32 %s43, 1
    %s45 = scalar_select %p42, %s43, %s44
    %p48 = pneg %p42
    %p49 = scmp.eq.s32.totalorder %s12, 2
    %p50 = por %p48, %p49
    %p51 = scmp.ne.s32.totalorder %s43, %s46
    %p52 = scmp.eq.s32.totalorder %s12, 0
    %p53 = por %p51, %p52
    %p54 = scmp.ne.s32.totalorder %s43, %s46
    %p55 = scmp.eq.s32.totalorder %s17, 2
    %p56 = por %p54, %p55
    %p57 = scmp.ne.s32.totalorder %s46, %s47
    %p58 = scmp.eq.s32.totalorder %s17, 0
    %p59 = por %p57, %p58
    %p60 = scmp.ne.s32.totalorder %s46, %s47
    %p61 = scmp.eq.s32.totalorder %s18, 2
    %p62 = por %p60, %p61
    %p64 = scmp.ne.s32.totalorder %s47, %s63
    %p65 = scmp.eq.s32.totalorder %s18, 0
    %p66 = por %p64, %p65
    %s67 = ssub.s32 %s12, %s19
    %p68 = scmp.eq.s32.totalorder %s67, 0
    %s70 = sadd.s32 %s69, 1
    %s71 = scalar_select %p68, %s69, %s70
    %p74 = pneg %p68
    %p75 = scmp.eq.s32.totalorder %s12, 2
    %p76 = por %p74, %p75
    %p77 = scmp.ne.s32.totalorder %s69, %s72
    %p78 = scmp.eq.s32.totalorder %s12, 0
    %p79 = por %p77, %p78
    %p80 = scmp.ne.s32.totalorder %s69, %s72
    %p81 = scmp.eq.s32.totalorder %s17, 2
    %p82 = por %p80, %p81
    %p83 = scmp.ne.s32.totalorder %s72, %s73
    %p84 = scmp.eq.s32.totalorder %s17, 0
    %p85 = por %p83, %p84
    %p86 = scmp.ne.s32.totalorder %s72, %s73
    %p87 = scmp.eq.s32.totalorder %s18, 2
    %p88 = por %p86, %p87
    %p90 = scmp.ne.s32.totalorder %s73, %s89
    %p91 = scmp.eq.s32.totalorder %s18, 0
    %p92 = por %p90, %p91
    %s94 = sadd.s32 %s93, 1
    %p97 = scmp.eq.s32.totalorder %s12, 2
    %p98 = scmp.ne.s32.totalorder %s93, %s95
    %p99 = scmp.eq.s32.totalorder %s12, 0
    %p100 = por %p98, %p99
    %p101 = scmp.ne.s32.totalorder %s93, %s95
    %p102 = scmp.eq.s32.totalorder %s17, 2
    %p103 = por %p101, %p102
    %p104 = scmp.ne.s32.totalorder %s95, %s96
    %p105 = scmp.eq.s32.totalorder %s17, 0
    %p106 = por %p104, %p105
    %p107 = scmp.ne.s32.totalorder %s95, %s96
    %p108 = scmp.eq.s32.totalorder %s18, 2
    %p109 = por %p107, %p108
    %p111 = scmp.ne.s32.totalorder %s96, %s110
    %p112 = scmp.eq.s32.totalorder %s18, 0
    %p113 = por %p111, %p112
    %s115 = sadd.s32 %s114, 1
    %p118 = scmp.eq.s32.totalorder %s12, 2
    %p119 = scmp.ne.s32.totalorder %s114, %s116
    %p120 = scmp.eq.s32.totalorder %s12, 0
    %p121 = por %p119, %p120
    %p122 = scmp.ne.s32.totalorder %s114, %s116
    %p123 = scmp.eq.s32.totalorder %s17, 2
    %p124 = por %p122, %p123
    %p125 = scmp.ne.s32.totalorder %s116, %s117
    %p126 = scmp.eq.s32.totalorder %s17, 0
    %p127 = por %p125, %p126
    %p128 = scmp.ne.s32.totalorder %s116, %s117
    %p129 = scmp.eq.s32.totalorder %s18, 2
    %p130 = por %p128, %p129
    %p132 = scmp.ne.s32.totalorder %s117, %s131
    %p133 = scmp.eq.s32.totalorder %s18, 0
    %p134 = por %p132, %p133
    %s136 = sadd.s32 %s135, 1
    %p139 = scmp.eq.s32.totalorder %s12, 2
    %p140 = scmp.ne.s32.totalorder %s135, %s137
    %p141 = scmp.eq.s32.totalorder %s12, 0
    %p142 = por %p140, %p141
    %p143 = scmp.ne.s32.totalorder %s135, %s137
    %p144 = scmp.eq.s32.totalorder %s17, 2
    %p145 = por %p143, %p144
    %p146 = scmp.ne.s32.totalorder %s137, %s138
    %p147 = scmp.eq.s32.totalorder %s17, 0
    %p148 = por %p146, %p147
    %p149 = scmp.ne.s32.totalorder %s137, %s138
    %p150 = scmp.eq.s32.totalorder %s18, 2
    %p151 = por %p149, %p150
    %p153 = scmp.ne.s32.totalorder %s138, %s152
    %p154 = scmp.eq.s32.totalorder %s18, 0
    %p155 = por %p153, %p154
    %s156 = ssub.s32 %s12, %s19
    %p157 = scmp.eq.s32.totalorder %s156, 0
    %s159 = sadd.s32 %s158, 1
    %s160 = scalar_select %p157, %s158, %s159
    %p163 = pneg %p157
    %p164 = scmp.eq.s32.totalorder %s12, 2
    %p165 = por %p163, %p164
    %p166 = scmp.ne.s32.totalorder %s158, %s161
    %p167 = scmp.eq.s32.totalorder %s12, 0
    %p168 = por %p166, %p167
    %p169 = scmp.ne.s32.totalorder %s158, %s161
    %p170 = scmp.eq.s32.totalorder %s17, 2
    %p171 = por %p169, %p170
    %p172 = scmp.ne.s32.totalorder %s161, %s162
    %p173 = scmp.eq.s32.totalorder %s17, 0
    %p174 = por %p172, %p173
    %p175 = scmp.ne.s32.totalorder %s161, %s162
    %p176 = scmp.eq.s32.totalorder %s18, 2
    %p177 = por %p175, %p176
    %p179 = scmp.ne.s32.totalorder %s162, %s178
    %p180 = scmp.eq.s32.totalorder %s18, 0
    %p181 = por %p179, %p180
    %p182 = scmp.le.s32.totalorder 1, %s12
    %p183 = scmp.lt.s32.totalorder %s12, 4
    %p184 = pnand %p182, %p183
    %p185 = pneg %p184
    // Predicated region
    $region9: #{gcn2_forward.6} parent=5 // pred_check
      _
    $region10: #{gcn2_forward.6} parent=5 // pred_check_branch
      %187 = sbr.rel (%p184) target = $region12
    $region11: #{gcn2_forward.6} parent=5 // pred_region
      %s188 = ssub.s32 %s12, 1
      // Predicated region
      $region13: #{gcn2_forward.6} parent=11 // pred_check
        %p189 = pneg %p33
      $region14: #{gcn2_forward.6} parent=11 // pred_check_branch
        %191 = sbr.rel (%p189) target = $region16
      $region15: #{gcn2_forward.6} parent=11 // pred_region
        _
      $region16: #{gcn2_forward.6} parent=11 // pred_fallthru
        _
      // Predicated region
      $region17: #{gcn2_forward.6} parent=11 // pred_check
        %p192 = pneg %p106
      $region18: #{gcn2_forward.6} parent=11 // pred_check_branch
        %194 = sbr.rel (%p192) target = $region20
      $region19: #{gcn2_forward.6} parent=11 // pred_region
        _
      $region20: #{gcn2_forward.6} parent=11 // pred_fallthru
        _
      // Predicated region
      $region21: #{gcn2_forward.6} parent=11 // pred_check
        %p195 = pneg %p127
      $region22: #{gcn2_forward.6} parent=11 // pred_check_branch
        %197 = sbr.rel (%p195) target = $region24
      $region23: #{gcn2_forward.6} parent=11 // pred_region
        _
      $region24: #{gcn2_forward.6} parent=11 // pred_fallthru
        _
      // Predicated region
      $region25: #{gcn2_forward.6} parent=11 // pred_check
        %p198 = pneg %p148
      $region26: #{gcn2_forward.6} parent=11 // pred_check_branch
        %200 = sbr.rel (%p198) target = $region28
      $region27: #{gcn2_forward.6} parent=11 // pred_region
        _
      $region28: #{gcn2_forward.6} parent=11 // pred_fallthru
        _
    $region12: #{gcn2_forward.6} parent=5 // pred_fallthru
      _
    %p201 = scmp.lt.s32.totalorder %s12, 3
    // Predicated region
    $region29: #{gcn2_forward.6} parent=5 // pred_check
      %p202 = pneg %p201
    $region30: #{gcn2_forward.6} parent=5 // pred_check_branch
      %204 = sbr.rel (%p202) target = $region32
    $region31: #{gcn2_forward.6} parent=5 // pred_region
      // Predicated region
      $region33: #{gcn2_forward.6} parent=31 // pred_check
        %p205 = pneg %p53
      $region34: #{gcn2_forward.6} parent=31 // pred_check_branch
        %207 = sbr.rel (%p205) target = $region36
      $region35: #{gcn2_forward.6} parent=31 // pred_region
        %s208 = smul.u32 32, %s12
        %p209 = scmp.lt.s32.totalorder %s208, 95
        %s210 = scalar_select %p209, %s208, 95
        %s211 = smul.addr %s210, 8
        %s212 = scalar_lea.vmem %s1, %s211
        %s213 = smul.u32 32, %s12
      $region36: #{gcn2_forward.6} parent=31 // pred_fallthru
        _
      // Predicated region
      $region37: #{gcn2_forward.6} parent=31 // pred_check
        %p214 = pneg %p79
      $region38: #{gcn2_forward.6} parent=31 // pred_check_branch
        %216 = sbr.rel (%p214) target = $region40
      $region39: #{gcn2_forward.6} parent=31 // pred_region
        %s217 = smul.u32 32, %s12
        %p218 = scmp.lt.s32.totalorder %s217, 95
        %s219 = scalar_select %p218, %s217, 95
        %s220 = smul.addr %s219, 8
        %s221 = scalar_lea.vmem %s2, %s220
        %s222 = smul.u32 32, %s12
      $region40: #{gcn2_forward.6} parent=31 // pred_fallthru
        _
    $region32: #{gcn2_forward.6} parent=5 // pred_fallthru
      _
    %p223 = scmp.le.s32.totalorder 1, %s12
    %p224 = scmp.lt.s32.totalorder %s12, 4
    %p225 = pnand %p223, %p224
    %p226 = pneg %p225
    // Predicated region
    $region41: #{gcn2_forward.6} parent=5 // pred_check
      _
    $region42: #{gcn2_forward.6} parent=5 // pred_check_branch
      %228 = sbr.rel (%p225) target = $region44
    $region43: #{gcn2_forward.6} parent=5 // pred_region
      %s229 = ssub.s32 %s12, 1
      %p230 = pneg %p33
      %p231 = pneg %p30
      %s232 = smul.u32 32, %s17
      %p233 = scmp.lt.s32.totalorder %s232, 95
      %s234 = scalar_select %p233, %s232, 95
      %s235 = smul.addr %s234, 8
      %s236 = scalar_lea.vmem %s1, %s235
      %p237 = pneg %p59
      %p238 = pneg %p56
      %s239 = smul.u32 32, %s17
      %p240 = scmp.lt.s32.totalorder %s239, 95
      %s241 = scalar_select %p240, %s239, 95
      %s242 = smul.addr %s241, 8
      %s243 = scalar_lea.vmem %s2, %s242
      %p244 = pneg %p85
      %p245 = pneg %p82
      %p246 = pneg %p106
      %p247 = pneg %p103
      %p248 = pneg %p127
      %p249 = pneg %p124
      %p250 = pneg %p148
      %p251 = pneg %p145
      %p252 = pneg %p174
      %p253 = pneg %p171
      %s254 = smul.u32 32, %s17
      %p255 = scmp.lt.s32.totalorder %s254, 95
      %s256 = scalar_select %p255, %s254, 95
      %s257 = smul.addr %s256, 8
      %s258 = scalar_lea.vmem %s6, %s257
      %s259 = smul.u32 32, %s17
      %p260 = scmp.lt.s32.totalorder %s259, 95
      %s261 = scalar_select %p260, %s259, 95
      %s262 = smul.addr %s261, 8
      %s263 = scalar_lea.vmem %s1, %s262
      %s264 = smul.u32 32, %s17
      %s265 = smul.u32 32, %s17
      %p266 = scmp.lt.s32.totalorder %s265, 95
      %s267 = scalar_select %p266, %s265, 95
      %s268 = smul.addr %s267, 8
      %s269 = scalar_lea.vmem %s2, %s268
      %s270 = smul.u32 32, %s17
      %s271 = smul.u32 32, %s17
      %p272 = scmp.lt.s32.totalorder %s271, 95
      %s273 = scalar_select %p272, %s271, 95
      %s274 = smul.addr %s273, 8
      %s275 = scalar_lea.vmem %s6, %s274
      %s276 = smul.u32 32, %s17
      %v277 = vld [vmem:[%s269] sm:$0xff]
      %v278 = vld [vmem:[%s269 + $0x8] sm:$0xff]
      %v279 = vld [vmem:[%s269 + $0x10] sm:$0xff]
      %v280 = vld [vmem:[%s269 + $0x18] sm:$0xff]
      %v281 = vld [vmem:[%s269 + $0x20] sm:$0xff]
      %v282 = vld [vmem:[%s269 + $0x28] sm:$0xff]
      %v283 = vld [vmem:[%s269 + $0x30] sm:$0xff]
      %v284 = vld [vmem:[%s269 + $0x38] sm:$0xff]
      %v285 = vld [vmem:[%s269 + $0x40] sm:$0xff]
      %v286 = vld [vmem:[%s269 + $0x48] sm:$0xff]
      %v287 = vld [vmem:[%s269 + $0x50] sm:$0xff]
      %v288 = vld [vmem:[%s269 + $0x58] sm:$0xff]
      %v289 = vld [vmem:[%s269 + $0x60] sm:$0xff]
      %v290 = vld [vmem:[%s269 + $0x68] sm:$0xff]
      %v291 = vld [vmem:[%s269 + $0x70] sm:$0xff]
      %v292 = vld [vmem:[%s269 + $0x78] sm:$0xff]
      %v293 = vld [vmem:[%s269 + $0x80] sm:$0xff]
      %v294 = vld [vmem:[%s269 + $0x88] sm:$0xff]
      %v295 = vld [vmem:[%s269 + $0x90] sm:$0xff]
      %v296 = vld [vmem:[%s269 + $0x98] sm:$0xff]
      %v297 = vld [vmem:[%s269 + $0xa0] sm:$0xff]
      %v298 = vld [vmem:[%s269 + $0xa8] sm:$0xff]
      %v299 = vld [vmem:[%s269 + $0xb0] sm:$0xff]
      %v300 = vld [vmem:[%s269 + $0xb8] sm:$0xff]
      %v301 = vld [vmem:[%s269 + $0xc0] sm:$0xff]
      %v302 = vld [vmem:[%s269 + $0xc8] sm:$0xff]
      %v303 = vld [vmem:[%s269 + $0xd0] sm:$0xff]
      %v304 = vld [vmem:[%s269 + $0xd8] sm:$0xff]
      %v305 = vld [vmem:[%s269 + $0xe0] sm:$0xff]
      %v306 = vld [vmem:[%s269 + $0xe8] sm:$0xff]
      %v307 = vld [vmem:[%s269 + $0xf0] sm:$0xff]
      %v308 = vld [vmem:[%s269 + $0xf8] sm:$0xff]
      %v309 = vlaneseq
      %v310 = vand.u32 %v309, 127
      %v311 = vadd.s32 %v310, 128
      %312 = vset.pattern.permute.xlu0 0
      %313 = vperm.xlu0 %312, %v277
      %v314 = vpop.permute.xlu0 %313
      %315 = vset.pattern.permute.xlu0 0
      %316 = vperm.xlu0 %315, %v278
      %v317 = vpop.permute.xlu0 %316
      %318 = vset.pattern.permute.xlu0 0
      %319 = vperm.xlu0 %318, %v279
      %v320 = vpop.permute.xlu0 %319
      %321 = vset.pattern.permute.xlu0 0
      %322 = vperm.xlu0 %321, %v280
      %v323 = vpop.permute.xlu0 %322
      %324 = vset.pattern.permute.xlu0 0
      %325 = vperm.xlu0 %324, %v281
      %v326 = vpop.permute.xlu0 %325
      %327 = vset.pattern.permute.xlu0 0
      %328 = vperm.xlu0 %327, %v282
      %v329 = vpop.permute.xlu0 %328
      %330 = vset.pattern.permute.xlu0 0
      %331 = vperm.xlu0 %330, %v283
      %v332 = vpop.permute.xlu0 %331
      %333 = vset.pattern.permute.xlu0 0
      %334 = vperm.xlu0 %333, %v284
      %v335 = vpop.permute.xlu0 %334
      %336 = vset.pattern.permute.xlu0 0
      %337 = vperm.xlu0 %336, %v285
      %v338 = vpop.permute.xlu0 %337
      %339 = vset.pattern.permute.xlu0 0
      %340 = vperm.xlu0 %339, %v286
      %v341 = vpop.permute.xlu0 %340
      %342 = vset.pattern.permute.xlu0 0
      %343 = vperm.xlu0 %342, %v287
      %v344 = vpop.permute.xlu0 %343
      %345 = vset.pattern.permute.xlu0 0
      %346 = vperm.xlu0 %345, %v288
      %v347 = vpop.permute.xlu0 %346
      %348 = vset.pattern.permute.xlu0 0
      %349 = vperm.xlu0 %348, %v289
      %v350 = vpop.permute.xlu0 %349
      %351 = vset.pattern.permute.xlu0 0
      %352 = vperm.xlu0 %351, %v290
      %v353 = vpop.permute.xlu0 %352
      %354 = vset.pattern.permute.xlu0 0
      %355 = vperm.xlu0 %354, %v291
      %v356 = vpop.permute.xlu0 %355
      %357 = vset.pattern.permute.xlu0 0
      %358 = vperm.xlu0 %357, %v292
      %v359 = vpop.permute.xlu0 %358
      %360 = vset.pattern.permute.xlu0 0
      %361 = vperm.xlu0 %360, %v293
      %v362 = vpop.permute.xlu0 %361
      %363 = vset.pattern.permute.xlu0 0
      %364 = vperm.xlu0 %363, %v294
      %v365 = vpop.permute.xlu0 %364
      %366 = vset.pattern.permute.xlu0 0
      %367 = vperm.xlu0 %366, %v295
      %v368 = vpop.permute.xlu0 %367
      %369 = vset.pattern.permute.xlu0 0
      %370 = vperm.xlu0 %369, %v296
      %v371 = vpop.permute.xlu0 %370
      %372 = vset.pattern.permute.xlu0 0
      %373 = vperm.xlu0 %372, %v297
      %v374 = vpop.permute.xlu0 %373
      %375 = vset.pattern.permute.xlu0 0
      %376 = vperm.xlu0 %375, %v298
      %v377 = vpop.permute.xlu0 %376
      %378 = vset.pattern.permute.xlu0 0
      %379 = vperm.xlu0 %378, %v299
      %v380 = vpop.permute.xlu0 %379
      %381 = vset.pattern.permute.xlu0 0
      %382 = vperm.xlu0 %381, %v300
      %v383 = vpop.permute.xlu0 %382
      %384 = vset.pattern.permute.xlu0 0
      %385 = vperm.xlu0 %384, %v301
      %v386 = vpop.permute.xlu0 %385
      %387 = vset.pattern.permute.xlu0 0
      %388 = vperm.xlu0 %387, %v302
      %v389 = vpop.permute.xlu0 %388
      %390 = vset.pattern.permute.xlu0 0
      %391 = vperm.xlu0 %390, %v303
      %v392 = vpop.permute.xlu0 %391
      %393 = vset.pattern.permute.xlu0 0
      %394 = vperm.xlu0 %393, %v304
      %v395 = vpop.permute.xlu0 %394
      %396 = vset.pattern.permute.xlu0 0
      %397 = vperm.xlu0 %396, %v305
      %v398 = vpop.permute.xlu0 %397
      %399 = vset.pattern.permute.xlu0 0
      %400 = vperm.xlu0 %399, %v306
      %v401 = vpop.permute.xlu0 %400
      %402 = vset.pattern.permute.xlu0 0
      %403 = vperm.xlu0 %402, %v307
      %v404 = vpop.permute.xlu0 %403
      %405 = vset.pattern.permute.xlu0 0
      %406 = vperm.xlu0 %405, %v308
      %v407 = vpop.permute.xlu0 %406
      %vm408 = vcmp.eq.s32.totalorder %v314, %v310
      %vm409 = vcmp.eq.s32.totalorder %v314, %v311
      %vm410 = vcmp.eq.s32.totalorder %v317, %v310
      %vm411 = vcmp.eq.s32.totalorder %v317, %v311
      %vm412 = vcmp.eq.s32.totalorder %v320, %v310
      %vm413 = vcmp.eq.s32.totalorder %v320, %v311
      %vm414 = vcmp.eq.s32.totalorder %v323, %v310
      %vm415 = vcmp.eq.s32.totalorder %v323, %v311
      %vm416 = vcmp.eq.s32.totalorder %v326, %v310
      %vm417 = vcmp.eq.s32.totalorder %v326, %v311
      %vm418 = vcmp.eq.s32.totalorder %v329, %v310
      %vm419 = vcmp.eq.s32.totalorder %v329, %v311
      %vm420 = vcmp.eq.s32.totalorder %v332, %v310
      %vm421 = vcmp.eq.s32.totalorder %v332, %v311
      %vm422 = vcmp.eq.s32.totalorder %v335, %v310
      %vm423 = vcmp.eq.s32.totalorder %v335, %v311
      %vm424 = vcmp.eq.s32.totalorder %v338, %v310
      %vm425 = vcmp.eq.s32.totalorder %v338, %v311
      %vm426 = vcmp.eq.s32.totalorder %v341, %v310
      %vm427 = vcmp.eq.s32.totalorder %v341, %v311
      %vm428 = vcmp.eq.s32.totalorder %v344, %v310
      %vm429 = vcmp.eq.s32.totalorder %v344, %v311
      %vm430 = vcmp.eq.s32.totalorder %v347, %v310
      %vm431 = vcmp.eq.s32.totalorder %v347, %v311
      %vm432 = vcmp.eq.s32.totalorder %v350, %v310
      %vm433 = vcmp.eq.s32.totalorder %v350, %v311
      %vm434 = vcmp.eq.s32.totalorder %v353, %v310
      %vm435 = vcmp.eq.s32.totalorder %v353, %v311
      %vm436 = vcmp.eq.s32.totalorder %v356, %v310
      %vm437 = vcmp.eq.s32.totalorder %v356, %v311
      %vm438 = vcmp.eq.s32.totalorder %v359, %v310
      %vm439 = vcmp.eq.s32.totalorder %v359, %v311
      %vm440 = vcmp.eq.s32.totalorder %v362, %v310
      %vm441 = vcmp.eq.s32.totalorder %v362, %v311
      %vm442 = vcmp.eq.s32.totalorder %v365, %v310
      %vm443 = vcmp.eq.s32.totalorder %v365, %v311
      %vm444 = vcmp.eq.s32.totalorder %v368, %v310
      %vm445 = vcmp.eq.s32.totalorder %v368, %v311
      %vm446 = vcmp.eq.s32.totalorder %v371, %v310
      %vm447 = vcmp.eq.s32.totalorder %v371, %v311
      %vm448 = vcmp.eq.s32.totalorder %v374, %v310
      %vm449 = vcmp.eq.s32.totalorder %v374, %v311
      %vm450 = vcmp.eq.s32.totalorder %v377, %v310
      %vm451 = vcmp.eq.s32.totalorder %v377, %v311
      %vm452 = vcmp.eq.s32.totalorder %v380, %v310
      %vm453 = vcmp.eq.s32.totalorder %v380, %v311
      %vm454 = vcmp.eq.s32.totalorder %v383, %v310
      %vm455 = vcmp.eq.s32.totalorder %v383, %v311
      %vm456 = vcmp.eq.s32.totalorder %v386, %v310
      %vm457 = vcmp.eq.s32.totalorder %v386, %v311
      %vm458 = vcmp.eq.s32.totalorder %v389, %v310
      %vm459 = vcmp.eq.s32.totalorder %v389, %v311
      %vm460 = vcmp.eq.s32.totalorder %v392, %v310
      %vm461 = vcmp.eq.s32.totalorder %v392, %v311
      %vm462 = vcmp.eq.s32.totalorder %v395, %v310
      %vm463 = vcmp.eq.s32.totalorder %v395, %v311
      %vm464 = vcmp.eq.s32.totalorder %v398, %v310
      %vm465 = vcmp.eq.s32.totalorder %v398, %v311
      %vm466 = vcmp.eq.s32.totalorder %v401, %v310
      %vm467 = vcmp.eq.s32.totalorder %v401, %v311
      %vm468 = vcmp.eq.s32.totalorder %v404, %v310
      %vm469 = vcmp.eq.s32.totalorder %v404, %v311
      %vm470 = vcmp.eq.s32.totalorder %v407, %v310
      %vm471 = vcmp.eq.s32.totalorder %v407, %v311
      %v472 = vsel %vm408, 1, 0
      %v473 = vsel %vm409, 1, 0
      %v474 = vsel %vm410, 1, 0
      %v475 = vsel %vm411, 1, 0
      %v476 = vsel %vm412, 1, 0
      %v477 = vsel %vm413, 1, 0
      %v478 = vsel %vm414, 1, 0
      %v479 = vsel %vm415, 1, 0
      %v480 = vsel %vm416, 1, 0
      %v481 = vsel %vm417, 1, 0
      %v482 = vsel %vm418, 1, 0
      %v483 = vsel %vm419, 1, 0
      %v484 = vsel %vm420, 1, 0
      %v485 = vsel %vm421, 1, 0
      %v486 = vsel %vm422, 1, 0
      %v487 = vsel %vm423, 1, 0
      %v488 = vsel %vm424, 1, 0
      %v489 = vsel %vm425, 1, 0
      %v490 = vsel %vm426, 1, 0
      %v491 = vsel %vm427, 1, 0
      %v492 = vsel %vm428, 1, 0
      %v493 = vsel %vm429, 1, 0
      %v494 = vsel %vm430, 1, 0
      %v495 = vsel %vm431, 1, 0
      %v496 = vsel %vm432, 1, 0
      %v497 = vsel %vm433, 1, 0
      %v498 = vsel %vm434, 1, 0
      %v499 = vsel %vm435, 1, 0
      %v500 = vsel %vm436, 1, 0
      %v501 = vsel %vm437, 1, 0
      %v502 = vsel %vm438, 1, 0
      %v503 = vsel %vm439, 1, 0
      %v504 = vsel %vm440, 1, 0
      %v505 = vsel %vm441, 1, 0
      %v506 = vsel %vm442, 1, 0
      %v507 = vsel %vm443, 1, 0
      %v508 = vsel %vm444, 1, 0
      %v509 = vsel %vm445, 1, 0
      %v510 = vsel %vm446, 1, 0
      %v511 = vsel %vm447, 1, 0
      %v512 = vsel %vm448, 1, 0
      %v513 = vsel %vm449, 1, 0
      %v514 = vsel %vm450, 1, 0
      %v515 = vsel %vm451, 1, 0
      %v516 = vsel %vm452, 1, 0
      %v517 = vsel %vm453, 1, 0
      %v518 = vsel %vm454, 1, 0
      %v519 = vsel %vm455, 1, 0
      %v520 = vsel %vm456, 1, 0
      %v521 = vsel %vm457, 1, 0
      %v522 = vsel %vm458, 1, 0
      %v523 = vsel %vm459, 1, 0
      %v524 = vsel %vm460, 1, 0
      %v525 = vsel %vm461, 1, 0
      %v526 = vsel %vm462, 1, 0
      %v527 = vsel %vm463, 1, 0
      %v528 = vsel %vm464, 1, 0
      %v529 = vsel %vm465, 1, 0
      %v530 = vsel %vm466, 1, 0
      %v531 = vsel %vm467, 1, 0
      %v532 = vsel %vm468, 1, 0
      %v533 = vsel %vm469, 1, 0
      %v534 = vsel %vm470, 1, 0
      %v535 = vsel %vm471, 1, 0
      %v536 = vcvt.s32.f32 %v472
      %v537 = vcvt.s32.f32 %v473
      %v538 = vcvt.s32.f32 %v474
      %v539 = vcvt.s32.f32 %v475
      %v540 = vcvt.s32.f32 %v476
      %v541 = vcvt.s32.f32 %v477
      %v542 = vcvt.s32.f32 %v478
      %v543 = vcvt.s32.f32 %v479
      %v544 = vcvt.s32.f32 %v480
      %v545 = vcvt.s32.f32 %v481
      %v546 = vcvt.s32.f32 %v482
      %v547 = vcvt.s32.f32 %v483
      %v548 = vcvt.s32.f32 %v484
      %v549 = vcvt.s32.f32 %v485
      %v550 = vcvt.s32.f32 %v486
      %v551 = vcvt.s32.f32 %v487
      %v552 = vcvt.s32.f32 %v488
      %v553 = vcvt.s32.f32 %v489
      %v554 = vcvt.s32.f32 %v490
      %v555 = vcvt.s32.f32 %v491
      %v556 = vcvt.s32.f32 %v492
      %v557 = vcvt.s32.f32 %v493
      %v558 = vcvt.s32.f32 %v494
      %v559 = vcvt.s32.f32 %v495
      %v560 = vcvt.s32.f32 %v496
      %v561 = vcvt.s32.f32 %v497
      %v562 = vcvt.s32.f32 %v498
      %v563 = vcvt.s32.f32 %v499
      %v564 = vcvt.s32.f32 %v500
      %v565 = vcvt.s32.f32 %v501
      %v566 = vcvt.s32.f32 %v502
      %v567 = vcvt.s32.f32 %v503
      %v568 = vcvt.s32.f32 %v504
      %v569 = vcvt.s32.f32 %v505
      %v570 = vcvt.s32.f32 %v506
      %v571 = vcvt.s32.f32 %v507
      %v572 = vcvt.s32.f32 %v508
      %v573 = vcvt.s32.f32 %v509
      %v574 = vcvt.s32.f32 %v510
      %v575 = vcvt.s32.f32 %v511
      %v576 = vcvt.s32.f32 %v512
      %v577 = vcvt.s32.f32 %v513
      %v578 = vcvt.s32.f32 %v514
      %v579 = vcvt.s32.f32 %v515
      %v580 = vcvt.s32.f32 %v516
      %v581 = vcvt.s32.f32 %v517
      %v582 = vcvt.s32.f32 %v518
      %v583 = vcvt.s32.f32 %v519
      %v584 = vcvt.s32.f32 %v520
      %v585 = vcvt.s32.f32 %v521
      %v586 = vcvt.s32.f32 %v522
      %v587 = vcvt.s32.f32 %v523
      %v588 = vcvt.s32.f32 %v524
      %v589 = vcvt.s32.f32 %v525
      %v590 = vcvt.s32.f32 %v526
      %v591 = vcvt.s32.f32 %v527
      %v592 = vcvt.s32.f32 %v528
      %v593 = vcvt.s32.f32 %v529
      %v594 = vcvt.s32.f32 %v530
      %v595 = vcvt.s32.f32 %v531
      %v596 = vcvt.s32.f32 %v532
      %v597 = vcvt.s32.f32 %v533
      %v598 = vcvt.s32.f32 %v534
      %v599 = vcvt.s32.f32 %v535
      %v600 = vld [vmem:[%s0] sm:$0xff]
      %v601 = vld [vmem:[%s0 + $0x8] sm:$0xff]
      %v602 = vld [vmem:[%s0 + $0x10] sm:$0xff]
      %v603 = vld [vmem:[%s0 + $0x18] sm:$0xff]
      %v604 = vld [vmem:[%s0 + $0x20] sm:$0xff]
      %v605 = vld [vmem:[%s0 + $0x28] sm:$0xff]
      %v606 = vld [vmem:[%s0 + $0x30] sm:$0xff]
      %v607 = vld [vmem:[%s0 + $0x38] sm:$0xff]
      %v608 = vld [vmem:[%s0 + $0x40] sm:$0xff]
      %v609 = vld [vmem:[%s0 + $0x48] sm:$0xff]
      %v610 = vld [vmem:[%s0 + $0x50] sm:$0xff]
      %v611 = vld [vmem:[%s0 + $0x58] sm:$0xff]
      %v612 = vld [vmem:[%s0 + $0x60] sm:$0xff]
      %v613 = vld [vmem:[%s0 + $0x68] sm:$0xff]
      %v614 = vld [vmem:[%s0 + $0x70] sm:$0xff]
      %v615 = vld [vmem:[%s0 + $0x78] sm:$0xff]
      %v616 = vld [vmem:[%s0 + $0x80] sm:$0xff]
      %v617 = vld [vmem:[%s0 + $0x88] sm:$0xff]
      %v618 = vld [vmem:[%s0 + $0x90] sm:$0xff]
      %v619 = vld [vmem:[%s0 + $0x98] sm:$0xff]
      %v620 = vld [vmem:[%s0 + $0xa0] sm:$0xff]
      %v621 = vld [vmem:[%s0 + $0xa8] sm:$0xff]
      %v622 = vld [vmem:[%s0 + $0xb0] sm:$0xff]
      %v623 = vld [vmem:[%s0 + $0xb8] sm:$0xff]
      %v624 = vld [vmem:[%s0 + $0xc0] sm:$0xff]
      %v625 = vld [vmem:[%s0 + $0xc8] sm:$0xff]
      %v626 = vld [vmem:[%s0 + $0xd0] sm:$0xff]
      %v627 = vld [vmem:[%s0 + $0xd8] sm:$0xff]
      %v628 = vld [vmem:[%s0 + $0xe0] sm:$0xff]
      %v629 = vld [vmem:[%s0 + $0xe8] sm:$0xff]
      %v630 = vld [vmem:[%s0 + $0xf0] sm:$0xff]
      %v631 = vld [vmem:[%s0 + $0xf8] sm:$0xff]
      %632 = vmatprep.subr.mxu0 0.0
      %633 = vmatpush1.msra.mxu0 %v600
      %634 = vmatprep.subr.mxu0 0.0
      %635 = vmatpush1.msra.mxu0 %v601
      %636 = vmatprep.subr.mxu0 0.0
      %637 = vmatpush1.msra.mxu0 %v602
      %638 = vmatprep.subr.mxu0 0.0
      %639 = vmatpush1.msra.mxu0 %v603
      %640 = vmatprep.subr.mxu0 0.0
      %641 = vmatpush1.msra.mxu0 %v604
      %642 = vmatprep.subr.mxu0 0.0
      %643 = vmatpush1.msra.mxu0 %v605
      %644 = vmatprep.subr.mxu0 0.0
      %645 = vmatpush1.msra.mxu0 %v606
      %646 = vmatprep.subr.mxu0 0.0
      %647 = vmatpush1.msra.mxu0 %v607
      %648 = vmatprep.subr.mxu0 0.0
      %649 = vmatpush1.msra.mxu0 %v608
      %650 = vmatprep.subr.mxu0 0.0
      %651 = vmatpush1.msra.mxu0 %v609
      %652 = vmatprep.subr.mxu0 0.0
      %653 = vmatpush1.msra.mxu0 %v610
      %654 = vmatprep.subr.mxu0 0.0
      %655 = vmatpush1.msra.mxu0 %v611
      %656 = vmatprep.subr.mxu0 0.0
      %657 = vmatpush1.msra.mxu0 %v612
      %658 = vmatprep.subr.mxu0 0.0
      %659 = vmatpush1.msra.mxu0 %v613
      %660 = vmatprep.subr.mxu0 0.0
      %661 = vmatpush1.msra.mxu0 %v614
      %662 = vmatprep.subr.mxu0 0.0
      %663 = vmatpush1.msra.mxu0 %v615
      %664 = vmatprep.subr.mxu0 0.0
      %665 = vmatpush1.msra.mxu0 %v616
      %666 = vmatprep.subr.mxu0 0.0
      %667 = vmatpush1.msra.mxu0 %v617
      %668 = vmatprep.subr.mxu0 0.0
      %669 = vmatpush1.msra.mxu0 %v618
      %670 = vmatprep.subr.mxu0 0.0
      %671 = vmatpush1.msra.mxu0 %v619
      %672 = vmatprep.subr.mxu0 0.0
      %673 = vmatpush1.msra.mxu0 %v620
      %674 = vmatprep.subr.mxu0 0.0
      %675 = vmatpush1.msra.mxu0 %v621
      %676 = vmatprep.subr.mxu0 0.0
      %677 = vmatpush1.msra.mxu0 %v622
      %678 = vmatprep.subr.mxu0 0.0
      %679 = vmatpush1.msra.mxu0 %v623
      %680 = vmatprep.subr.mxu0 0.0
      %681 = vmatpush1.msra.mxu0 %v624
      %682 = vmatprep.subr.mxu0 0.0
      %683 = vmatpush1.msra.mxu0 %v625
      %684 = vmatprep.subr.mxu0 0.0
      %685 = vmatpush1.msra.mxu0 %v626
      %686 = vmatprep.subr.mxu0 0.0
      %687 = vmatpush1.msra.mxu0 %v627
      %688 = vmatprep.subr.mxu0 0.0
      %689 = vmatpush1.msra.mxu0 %v628
      %690 = vmatprep.subr.mxu0 0.0
      %691 = vmatpush1.msra.mxu0 %v629
      %692 = vmatprep.subr.mxu0 0.0
      %693 = vmatpush1.msra.mxu0 %v630
      %694 = vmatprep.subr.mxu0 0.0
      %695 = vmatpush1.msra.mxu0 %v631
      %696 = vmatprep.mubr.f32.mxu0 %v537
      %697 = vmatmul.mubr.f32.gmra.mrb[0].mxu0 %v536
      %v698 = vpop.f32.mrb[0].mxu0
      %v699 = vadd.f32 0.0, %v698
      %v700 = vpop.f32.mrb[0].mxu0
      %701 = vmatprep.mubr.f32.mxu0 %v539
      %702 = vmatmul.mubr.f32.gmra.mrb[0].mxu0 %v538
      %v703 = vpop.f32.mrb[0].mxu0
      %v704 = vadd.f32 0.0, %v703
      %v705 = vpop.f32.mrb[0].mxu0
      %706 = vmatprep.mubr.f32.mxu0 %v541
      %707 = vmatmul.mubr.f32.gmra.mrb[0].mxu0 %v540
      %v708 = vpop.f32.mrb[0].mxu0
      %v709 = vadd.f32 0.0, %v708
      %v710 = vpop.f32.mrb[0].mxu0
      %711 = vmatprep.mubr.f32.mxu0 %v543
      %712 = vmatmul.mubr.f32.gmra.mrb[0].mxu0 %v542
      %v713 = vpop.f32.mrb[0].mxu0
      %v714 = vadd.f32 0.0, %v713
      %v715 = vpop.f32.mrb[0].mxu0
      %716 = vmatprep.mubr.f32.mxu0 %v545
      %717 = vmatmul.mubr.f32.gmra.mrb[0].mxu0 %v544
      %v718 = vpop.f32.mrb[0].mxu0
      %v719 = vadd.f32 0.0, %v718
      %v720 = vpop.f32.mrb[0].mxu0
      %721 = vmatprep.mubr.f32.mxu0 %v547
      %722 = vmatmul.mubr.f32.gmra.mrb[0].mxu0 %v546
      %v723 = vpop.f32.mrb[0].mxu0
      %v724 = vadd.f32 0.0, %v723
      %v725 = vpop.f32.mrb[0].mxu0
      %726 = vmatprep.mubr.f32.mxu0 %v549
      %727 = vmatmul.mubr.f32.gmra.mrb[0].mxu0 %v548
      %v728 = vpop.f32.mrb[0].mxu0
      %v729 = vadd.f32 0.0, %v728
      %v730 = vpop.f32.mrb[0].mxu0
      %731 = vmatprep.mubr.f32.mxu0 %v551
      %732 = vmatmul.mubr.f32.gmra.mrb[0].mxu0 %v550
      %v733 = vpop.f32.mrb[0].mxu0
      %v734 = vadd.f32 0.0, %v733
      %v735 = vpop.f32.mrb[0].mxu0
      %736 = vmatprep.mubr.f32.mxu0 %v553
      %737 = vmatmul.mubr.f32.gmra.mrb[0].mxu0 %v552
      %v738 = vpop.f32.mrb[0].mxu0
      %v739 = vadd.f32 0.0, %v738
      %v740 = vpop.f32.mrb[0].mxu0
      %741 = vmatprep.mubr.f32.mxu0 %v555
      %742 = vmatmul.mubr.f32.gmra.mrb[0].mxu0 %v554
      %v743 = vpop.f32.mrb[0].mxu0
      %v744 = vadd.f32 0.0, %v743
      %v745 = vpop.f32.mrb[0].mxu0
      %746 = vmatprep.mubr.f32.mxu0 %v557
      %747 = vmatmul.mubr.f32.gmra.mrb[0].mxu0 %v556
      %v748 = vpop.f32.mrb[0].mxu0
      %v749 = vadd.f32 0.0, %v748
      %v750 = vpop.f32.mrb[0].mxu0
      %751 = vmatprep.mubr.f32.mxu0 %v559
      %752 = vmatmul.mubr.f32.gmra.mrb[0].mxu0 %v558
      %v753 = vpop.f32.mrb[0].mxu0
      %v754 = vadd.f32 0.0, %v753
      %v755 = vpop.f32.mrb[0].mxu0
      %756 = vmatprep.mubr.f32.mxu0 %v561
      %757 = vmatmul.mubr.f32.gmra.mrb[0].mxu0 %v560
      %v758 = vpop.f32.mrb[0].mxu0
      %v759 = vadd.f32 0.0, %v758
      %v760 = vpop.f32.mrb[0].mxu0
      %761 = vmatprep.mubr.f32.mxu0 %v563
      %762 = vmatmul.mubr.f32.gmra.mrb[0].mxu0 %v562
      %v763 = vpop.f32.mrb[0].mxu0
      %v764 = vadd.f32 0.0, %v763
      %v765 = vpop.f32.mrb[0].mxu0
      %766 = vmatprep.mubr.f32.mxu0 %v565
      %767 = vmatmul.mubr.f32.gmra.mrb[0].mxu0 %v564
      %v768 = vpop.f32.mrb[0].mxu0
      %v769 = vadd.f32 0.0, %v768
      %v770 = vpop.f32.mrb[0].mxu0
      %771 = vmatprep.mubr.f32.mxu0 %v567
      %772 = vmatmul.mubr.f32.gmra.mrb[0].mxu0 %v566
      %v773 = vpop.f32.mrb[0].mxu0
      %v774 = vadd.f32 0.0, %v773
      %v775 = vpop.f32.mrb[0].mxu0
      %776 = vmatprep.mubr.f32.mxu0 %v569
      %777 = vmatmul.mubr.f32.gmra.mrb[0].mxu0 %v568
      %v778 = vpop.f32.mrb[0].mxu0
      %v779 = vadd.f32 0.0, %v778
      %v780 = vpop.f32.mrb[0].mxu0
      %781 = vmatprep.mubr.f32.mxu0 %v571
      %782 = vmatmul.mubr.f32.gmra.mrb[0].mxu0 %v570
      %v783 = vpop.f32.mrb[0].mxu0
      %v784 = vadd.f32 0.0, %v783
      %v785 = vpop.f32.mrb[0].mxu0
      %786 = vmatprep.mubr.f32.mxu0 %v573
      %787 = vmatmul.mubr.f32.gmra.mrb[0].mxu0 %v572
      %v788 = vpop.f32.mrb[0].mxu0
      %v789 = vadd.f32 0.0, %v788
      %v790 = vpop.f32.mrb[0].mxu0
      %791 = vmatprep.mubr.f32.mxu0 %v575
      %792 = vmatmul.mubr.f32.gmra.mrb[0].mxu0 %v574
      %v793 = vpop.f32.mrb[0].mxu0
      %v794 = vadd.f32 0.0, %v793
      %v795 = vpop.f32.mrb[0].mxu0
      %796 = vmatprep.mubr.f32.mxu0 %v577
      %797 = vmatmul.mubr.f32.gmra.mrb[0].mxu0 %v576
      %v798 = vpop.f32.mrb[0].mxu0
      %v799 = vadd.f32 0.0, %v798
      %v800 = vpop.f32.mrb[0].mxu0
      %801 = vmatprep.mubr.f32.mxu0 %v579
      %802 = vmatmul.mubr.f32.gmra.mrb[0].mxu0 %v578
      %v803 = vpop.f32.mrb[0].mxu0
      %v804 = vadd.f32 0.0, %v803
      %v805 = vpop.f32.mrb[0].mxu0
      %806 = vmatprep.mubr.f32.mxu0 %v581
      %807 = vmatmul.mubr.f32.gmra.mrb[0].mxu0 %v580
      %v808 = vpop.f32.mrb[0].mxu0
      %v809 = vadd.f32 0.0, %v808
      %v810 = vpop.f32.mrb[0].mxu0
      %811 = vmatprep.mubr.f32.mxu0 %v583
      %812 = vmatmul.mubr.f32.gmra.mrb[0].mxu0 %v582
      %v813 = vpop.f32.mrb[0].mxu0
      %v814 = vadd.f32 0.0, %v813
      %v815 = vpop.f32.mrb[0].mxu0
      %816 = vmatprep.mubr.f32.mxu0 %v585
      %817 = vmatmul.mubr.f32.gmra.mrb[0].mxu0 %v584
      %v818 = vpop.f32.mrb[0].mxu0
      %v819 = vadd.f32 0.0, %v818
      %v820 = vpop.f32.mrb[0].mxu0
      %821 = vmatprep.mubr.f32.mxu0 %v587
      %822 = vmatmul.mubr.f32.gmra.mrb[0].mxu0 %v586
      %v823 = vpop.f32.mrb[0].mxu0
      %v824 = vadd.f32 0.0, %v823
      %v825 = vpop.f32.mrb[0].mxu0
      %826 = vmatprep.mubr.f32.mxu0 %v589
      %827 = vmatmul.mubr.f32.gmra.mrb[0].mxu0 %v588
      %v828 = vpop.f32.mrb[0].mxu0
      %v829 = vadd.f32 0.0, %v828
      %v830 = vpop.f32.mrb[0].mxu0
      %831 = vmatprep.mubr.f32.mxu0 %v591
      %832 = vmatmul.mubr.f32.gmra.mrb[0].mxu0 %v590
      %v833 = vpop.f32.mrb[0].mxu0
      %v834 = vadd.f32 0.0, %v833
      %v835 = vpop.f32.mrb[0].mxu0
      %836 = vmatprep.mubr.f32.mxu0 %v593
      %837 = vmatmul.mubr.f32.gmra.mrb[0].mxu0 %v592
      %v838 = vpop.f32.mrb[0].mxu0
      %v839 = vadd.f32 0.0, %v838
      %v840 = vpop.f32.mrb[0].mxu0
      %841 = vmatprep.mubr.f32.mxu0 %v595
      %842 = vmatmul.mubr.f32.gmra.mrb[0].mxu0 %v594
      %v843 = vpop.f32.mrb[0].mxu0
      %v844 = vadd.f32 0.0, %v843
      %v845 = vpop.f32.mrb[0].mxu0
      %846 = vmatprep.mubr.f32.mxu0 %v597
      %847 = vmatmul.mubr.f32.gmra.mrb[0].mxu0 %v596
      %v848 = vpop.f32.mrb[0].mxu0
      %v849 = vadd.f32 0.0, %v848
      %v850 = vpop.f32.mrb[0].mxu0
      %851 = vmatprep.mubr.f32.mxu0 %v599
      %852 = vmatmul.mubr.f32.gmra.mrb[0].mxu0 %v598
      %v853 = vpop.f32.mrb[0].mxu0
      %v854 = vadd.f32 0.0, %v853
      %v855 = vpop.f32.mrb[0].mxu0
      %856 = vdwg.mxu0
      %v857 = vld [vmem:[%s3] sm:$0xff]
      %v858 = vld [vmem:[%s3 + $0x8] sm:$0xff]
      %v859 = vld [vmem:[%s3 + $0x10] sm:$0xff]
      %v860 = vld [vmem:[%s3 + $0x18] sm:$0xff]
      %v861 = vld [vmem:[%s3 + $0x20] sm:$0xff]
      %v862 = vld [vmem:[%s3 + $0x28] sm:$0xff]
      %v863 = vld [vmem:[%s3 + $0x30] sm:$0xff]
      %v864 = vld [vmem:[%s3 + $0x38] sm:$0xff]
      %v865 = vld [vmem:[%s3 + $0x40] sm:$0xff]
      %v866 = vld [vmem:[%s3 + $0x48] sm:$0xff]
      %v867 = vld [vmem:[%s3 + $0x50] sm:$0xff]
      %v868 = vld [vmem:[%s3 + $0x58] sm:$0xff]
      %v869 = vld [vmem:[%s3 + $0x60] sm:$0xff]
      %v870 = vld [vmem:[%s3 + $0x68] sm:$0xff]
      %v871 = vld [vmem:[%s3 + $0x70] sm:$0xff]
      %v872 = vld [vmem:[%s3 + $0x78] sm:$0xff]
      %v873 = vld [vmem:[%s263] sm:$0xff]
      %v874 = vld [vmem:[%s263 + $0x8] sm:$0xff]
      %v875 = vld [vmem:[%s263 + $0x10] sm:$0xff]
      %v876 = vld [vmem:[%s263 + $0x18] sm:$0xff]
      %v877 = vld [vmem:[%s263 + $0x20] sm:$0xff]
      %v878 = vld [vmem:[%s263 + $0x28] sm:$0xff]
      %v879 = vld [vmem:[%s263 + $0x30] sm:$0xff]
      %v880 = vld [vmem:[%s263 + $0x38] sm:$0xff]
      %v881 = vld [vmem:[%s263 + $0x40] sm:$0xff]
      %v882 = vld [vmem:[%s263 + $0x48] sm:$0xff]
      %v883 = vld [vmem:[%s263 + $0x50] sm:$0xff]
      %v884 = vld [vmem:[%s263 + $0x58] sm:$0xff]
      %v885 = vld [vmem:[%s263 + $0x60] sm:$0xff]
      %v886 = vld [vmem:[%s263 + $0x68] sm:$0xff]
      %v887 = vld [vmem:[%s263 + $0x70] sm:$0xff]
      %v888 = vld [vmem:[%s263 + $0x78] sm:$0xff]
      %v889 = vld [vmem:[%s263 + $0x80] sm:$0xff]
      %v890 = vld [vmem:[%s263 + $0x88] sm:$0xff]
      %v891 = vld [vmem:[%s263 + $0x90] sm:$0xff]
      %v892 = vld [vmem:[%s263 + $0x98] sm:$0xff]
      %v893 = vld [vmem:[%s263 + $0xa0] sm:$0xff]
      %v894 = vld [vmem:[%s263 + $0xa8] sm:$0xff]
      %v895 = vld [vmem:[%s263 + $0xb0] sm:$0xff]
      %v896 = vld [vmem:[%s263 + $0xb8] sm:$0xff]
      %v897 = vld [vmem:[%s263 + $0xc0] sm:$0xff]
      %v898 = vld [vmem:[%s263 + $0xc8] sm:$0xff]
      %v899 = vld [vmem:[%s263 + $0xd0] sm:$0xff]
      %v900 = vld [vmem:[%s263 + $0xd8] sm:$0xff]
      %v901 = vld [vmem:[%s263 + $0xe0] sm:$0xff]
      %v902 = vld [vmem:[%s263 + $0xe8] sm:$0xff]
      %v903 = vld [vmem:[%s263 + $0xf0] sm:$0xff]
      %v904 = vld [vmem:[%s263 + $0xf8] sm:$0xff]
      %v905 = vld [vmem:[%s4] sm:$0xff]
      %v906 = vld [vmem:[%s4 + $0x8] sm:$0xff]
      %v907 = vld [vmem:[%s4 + $0x10] sm:$0xff]
      %v908 = vld [vmem:[%s4 + $0x18] sm:$0xff]
      %v909 = vld [vmem:[%s4 + $0x20] sm:$0xff]
      %v910 = vld [vmem:[%s4 + $0x28] sm:$0xff]
      %v911 = vld [vmem:[%s4 + $0x30] sm:$0xff]
      %v912 = vld [vmem:[%s4 + $0x38] sm:$0xff]
      %v913 = vld [vmem:[%s4 + $0x40] sm:$0xff]
      %v914 = vld [vmem:[%s4 + $0x48] sm:$0xff]
      %v915 = vld [vmem:[%s4 + $0x50] sm:$0xff]
      %v916 = vld [vmem:[%s4 + $0x58] sm:$0xff]
      %v917 = vld [vmem:[%s4 + $0x60] sm:$0xff]
      %v918 = vld [vmem:[%s4 + $0x68] sm:$0xff]
      %v919 = vld [vmem:[%s4 + $0x70] sm:$0xff]
      %v920 = vld [vmem:[%s4 + $0x78] sm:$0xff]
      %921 = vmatprep.subr.mxu0 0.0
      %922 = vmatpush1.msra.mxu0 %v905
      %923 = vmatprep.subr.mxu0 0.0
      %924 = vmatpush1.msra.mxu0 %v906
      %925 = vmatprep.subr.mxu0 0.0
      %926 = vmatpush1.msra.mxu0 %v907
      %927 = vmatprep.subr.mxu0 0.0
      %928 = vmatpush1.msra.mxu0 %v908
      %929 = vmatprep.subr.mxu0 0.0
      %930 = vmatpush1.msra.mxu0 %v909
      %931 = vmatprep.subr.mxu0 0.0
      %932 = vmatpush1.msra.mxu0 %v910
      %933 = vmatprep.subr.mxu0 0.0
      %934 = vmatpush1.msra.mxu0 %v911
      %935 = vmatprep.subr.mxu0 0.0
      %936 = vmatpush1.msra.mxu0 %v912
      %937 = vmatprep.subr.mxu0 0.0
      %938 = vmatpush1.msra.mxu0 %v913
      %939 = vmatprep.subr.mxu0 0.0
      %940 = vmatpush1.msra.mxu0 %v914
      %941 = vmatprep.subr.mxu0 0.0
      %942 = vmatpush1.msra.mxu0 %v915
      %943 = vmatprep.subr.mxu0 0.0
      %944 = vmatpush1.msra.mxu0 %v916
      %945 = vmatprep.subr.mxu0 0.0
      %946 = vmatpush1.msra.mxu0 %v917
      %947 = vmatprep.subr.mxu0 0.0
      %948 = vmatpush1.msra.mxu0 %v918
      %949 = vmatprep.subr.mxu0 0.0
      %950 = vmatpush1.msra.mxu0 %v919
      %951 = vmatprep.subr.mxu0 0.0
      %952 = vmatpush1.msra.mxu0 %v920
      %953 = vmatprep.subr.mxu0 0.0
      %954 = vmatpush1.msra.mxu0 0.0
      %955 = vmatprep.subr.mxu0 0.0
      %956 = vmatpush1.msra.mxu0 0.0
      %957 = vmatprep.subr.mxu0 0.0
      %958 = vmatpush1.msra.mxu0 0.0
      %959 = vmatprep.subr.mxu0 0.0
      %960 = vmatpush1.msra.mxu0 0.0
      %961 = vmatprep.subr.mxu0 0.0
      %962 = vmatpush1.msra.mxu0 0.0
      %963 = vmatprep.subr.mxu0 0.0
      %964 = vmatpush1.msra.mxu0 0.0
      %965 = vmatprep.subr.mxu0 0.0
      %966 = vmatpush1.msra.mxu0 0.0
      %967 = vmatprep.subr.mxu0 0.0
      %968 = vmatpush1.msra.mxu0 0.0
      %969 = vmatprep.subr.mxu0 0.0
      %970 = vmatpush1.msra.mxu0 0.0
      %971 = vmatprep.subr.mxu0 0.0
      %972 = vmatpush1.msra.mxu0 0.0
      %973 = vmatprep.subr.mxu0 0.0
      %974 = vmatpush1.msra.mxu0 0.0
      %975 = vmatprep.subr.mxu0 0.0
      %976 = vmatpush1.msra.mxu0 0.0
      %977 = vmatprep.subr.mxu0 0.0
      %978 = vmatpush1.msra.mxu0 0.0
      %979 = vmatprep.subr.mxu0 0.0
      %980 = vmatpush1.msra.mxu0 0.0
      %981 = vmatprep.subr.mxu0 0.0
      %982 = vmatpush1.msra.mxu0 0.0
      %983 = vmatprep.subr.mxu0 0.0
      %984 = vmatpush1.msra.mxu0 0.0
      %985 = vmatprep.mubr.f32.mxu0 0.0
      %986 = vmatmul.mubr.f32.gmra.mrb[0].mxu0 %v873
      %v987 = vpop.f32.mrb[0].mxu0
      %v988 = vadd.f32 0.0, %v987
      %v989 = vpop.f32.mrb[0].mxu0
      %990 = vmatprep.mubr.f32.mxu0 0.0
      %991 = vmatmul.mubr.f32.gmra.mrb[0].mxu0 %v874
      %v992 = vpop.f32.mrb[0].mxu0
      %v993 = vadd.f32 0.0, %v992
      %v994 = vpop.f32.mrb[0].mxu0
      %995 = vmatprep.mubr.f32.mxu0 0.0
      %996 = vmatmul.mubr.f32.gmra.mrb[0].mxu0 %v875
      %v997 = vpop.f32.mrb[0].mxu0
      %v998 = vadd.f32 0.0, %v997
      %v999 = vpop.f32.mrb[0].mxu0
      %1000 = vmatprep.mubr.f32.mxu0 0.0
      %1001 = vmatmul.mubr.f32.gmra.mrb[0].mxu0 %v876
      %v1002 = vpop.f32.mrb[0].mxu0
      %v1003 = vadd.f32 0.0, %v1002
      %v1004 = vpop.f32.mrb[0].mxu0
      %1005 = vmatprep.mubr.f32.mxu0 0.0
      %1006 = vmatmul.mubr.f32.gmra.mrb[0].mxu0 %v877
      %v1007 = vpop.f32.mrb[0].mxu0
      %v1008 = vadd.f32 0.0, %v1007
      %v1009 = vpop.f32.mrb[0].mxu0
      %1010 = vmatprep.mubr.f32.mxu0 0.0
      %1011 = vmatmul.mubr.f32.gmra.mrb[0].mxu0 %v878
      %v1012 = vpop.f32.mrb[0].mxu0
      %v1013 = vadd.f32 0.0, %v1012
      %v1014 = vpop.f32.mrb[0].mxu0
      %1015 = vmatprep.mubr.f32.mxu0 0.0
      %1016 = vmatmul.mubr.f32.gmra.mrb[0].mxu0 %v879
      %v1017 = vpop.f32.mrb[0].mxu0
      %v1018 = vadd.f32 0.0, %v1017
      %v1019 = vpop.f32.mrb[0].mxu0
      %1020 = vmatprep.mubr.f32.mxu0 0.0
      %1021 = vmatmul.mubr.f32.gmra.mrb[0].mxu0 %v880
      %v1022 = vpop.f32.mrb[0].mxu0
      %v1023 = vadd.f32 0.0, %v1022
      %v1024 = vpop.f32.mrb[0].mxu0
      %1025 = vmatprep.mubr.f32.mxu0 0.0
      %1026 = vmatmul.mubr.f32.gmra.mrb[0].mxu0 %v881
      %v1027 = vpop.f32.mrb[0].mxu0
      %v1028 = vadd.f32 0.0, %v1027
      %v1029 = vpop.f32.mrb[0].mxu0
      %1030 = vmatprep.mubr.f32.mxu0 0.0
      %1031 = vmatmul.mubr.f32.gmra.mrb[0].mxu0 %v882
      %v1032 = vpop.f32.mrb[0].mxu0
      %v1033 = vadd.f32 0.0, %v1032
      %v1034 = vpop.f32.mrb[0].mxu0
      %1035 = vmatprep.mubr.f32.mxu0 0.0
      %1036 = vmatmul.mubr.f32.gmra.mrb[0].mxu0 %v883
      %v1037 = vpop.f32.mrb[0].mxu0
      %v1038 = vadd.f32 0.0, %v1037
      %v1039 = vpop.f32.mrb[0].mxu0
      %1040 = vmatprep.mubr.f32.mxu0 0.0
      %1041 = vmatmul.mubr.f32.gmra.mrb[0].mxu0 %v884
      %v1042 = vpop.f32.mrb[0].mxu0
      %v1043 = vadd.f32 0.0, %v1042
      %v1044 = vpop.f32.mrb[0].mxu0
      %1045 = vmatprep.mubr.f32.mxu0 0.0
      %1046 = vmatmul.mubr.f32.gmra.mrb[0].mxu0 %v885
      %v1047 = vpop.f32.mrb[0].mxu0
      %v1048 = vadd.f32 0.0, %v1047
      %v1049 = vpop.f32.mrb[0].mxu0
      %1050 = vmatprep.mubr.f32.mxu0 0.0
      %1051 = vmatmul.mubr.f32.gmra.mrb[0].mxu0 %v886
      %v1052 = vpop.f32.mrb[0].mxu0
      %v1053 = vadd.f32 0.0, %v1052
      %v1054 = vpop.f32.mrb[0].mxu0
      %1055 = vmatprep.mubr.f32.mxu0 0.0
      %1056 = vmatmul.mubr.f32.gmra.mrb[0].mxu0 %v887
      %v1057 = vpop.f32.mrb[0].mxu0
      %v1058 = vadd.f32 0.0, %v1057
      %v1059 = vpop.f32.mrb[0].mxu0
      %1060 = vmatprep.mubr.f32.mxu0 0.0
      %1061 = vmatmul.mubr.f32.gmra.mrb[0].mxu0 %v888
      %v1062 = vpop.f32.mrb[0].mxu0
      %v1063 = vadd.f32 0.0, %v1062
      %v1064 = vpop.f32.mrb[0].mxu0
      %1065 = vmatprep.mubr.f32.mxu0 0.0
      %1066 = vmatmul.mubr.f32.gmra.mrb[0].mxu0 %v889
      %v1067 = vpop.f32.mrb[0].mxu0
      %v1068 = vadd.f32 0.0, %v1067
      %v1069 = vpop.f32.mrb[0].mxu0
      %1070 = vmatprep.mubr.f32.mxu0 0.0
      %1071 = vmatmul.mubr.f32.gmra.mrb[0].mxu0 %v890
      %v1072 = vpop.f32.mrb[0].mxu0
      %v1073 = vadd.f32 0.0, %v1072
      %v1074 = vpop.f32.mrb[0].mxu0
      %1075 = vmatprep.mubr.f32.mxu0 0.0
      %1076 = vmatmul.mubr.f32.gmra.mrb[0].mxu0 %v891
      %v1077 = vpop.f32.mrb[0].mxu0
      %v1078 = vadd.f32 0.0, %v1077
      %v1079 = vpop.f32.mrb[0].mxu0
      %1080 = vmatprep.mubr.f32.mxu0 0.0
      %1081 = vmatmul.mubr.f32.gmra.mrb[0].mxu0 %v892
      %v1082 = vpop.f32.mrb[0].mxu0
      %v1083 = vadd.f32 0.0, %v1082
      %v1084 = vpop.f32.mrb[0].mxu0
      %1085 = vmatprep.mubr.f32.mxu0 0.0
      %1086 = vmatmul.mubr.f32.gmra.mrb[0].mxu0 %v893
      %v1087 = vpop.f32.mrb[0].mxu0
      %v1088 = vadd.f32 0.0, %v1087
      %v1089 = vpop.f32.mrb[0].mxu0
      %1090 = vmatprep.mubr.f32.mxu0 0.0
      %1091 = vmatmul.mubr.f32.gmra.mrb[0].mxu0 %v894
      %v1092 = vpop.f32.mrb[0].mxu0
      %v1093 = vadd.f32 0.0, %v1092
      %v1094 = vpop.f32.mrb[0].mxu0
      %1095 = vmatprep.mubr.f32.mxu0 0.0
      %1096 = vmatmul.mubr.f32.gmra.mrb[0].mxu0 %v895
      %v1097 = vpop.f32.mrb[0].mxu0
      %v1098 = vadd.f32 0.0, %v1097
      %v1099 = vpop.f32.mrb[0].mxu0
      %1100 = vmatprep.mubr.f32.mxu0 0.0
      %1101 = vmatmul.mubr.f32.gmra.mrb[0].mxu0 %v896
      %v1102 = vpop.f32.mrb[0].mxu0
      %v1103 = vadd.f32 0.0, %v1102
      %v1104 = vpop.f32.mrb[0].mxu0
      %1105 = vmatprep.mubr.f32.mxu0 0.0
      %1106 = vmatmul.mubr.f32.gmra.mrb[0].mxu0 %v897
      %v1107 = vpop.f32.mrb[0].mxu0
      %v1108 = vadd.f32 0.0, %v1107
      %v1109 = vpop.f32.mrb[0].mxu0
      %1110 = vmatprep.mubr.f32.mxu0 0.0
      %1111 = vmatmul.mubr.f32.gmra.mrb[0].mxu0 %v898
      %v1112 = vpop.f32.mrb[0].mxu0
      %v1113 = vadd.f32 0.0, %v1112
      %v1114 = vpop.f32.mrb[0].mxu0
      %1115 = vmatprep.mubr.f32.mxu0 0.0
      %1116 = vmatmul.mubr.f32.gmra.mrb[0].mxu0 %v899
      %v1117 = vpop.f32.mrb[0].mxu0
      %v1118 = vadd.f32 0.0, %v1117
      %v1119 = vpop.f32.mrb[0].mxu0
      %1120 = vmatprep.mubr.f32.mxu0 0.0
      %1121 = vmatmul.mubr.f32.gmra.mrb[0].mxu0 %v900
      %v1122 = vpop.f32.mrb[0].mxu0
      %v1123 = vadd.f32 0.0, %v1122
      %v1124 = vpop.f32.mrb[0].mxu0
      %1125 = vmatprep.mubr.f32.mxu0 0.0
      %1126 = vmatmul.mubr.f32.gmra.mrb[0].mxu0 %v901
      %v1127 = vpop.f32.mrb[0].mxu0
      %v1128 = vadd.f32 0.0, %v1127
      %v1129 = vpop.f32.mrb[0].mxu0
      %1130 = vmatprep.mubr.f32.mxu0 0.0
      %1131 = vmatmul.mubr.f32.gmra.mrb[0].mxu0 %v902
      %v1132 = vpop.f32.mrb[0].mxu0
      %v1133 = vadd.f32 0.0, %v1132
      %v1134 = vpop.f32.mrb[0].mxu0
      %1135 = vmatprep.mubr.f32.mxu0 0.0
      %1136 = vmatmul.mubr.f32.gmra.mrb[0].mxu0 %v903
      %v1137 = vpop.f32.mrb[0].mxu0
      %v1138 = vadd.f32 0.0, %v1137
      %v1139 = vpop.f32.mrb[0].mxu0
      %1140 = vmatprep.mubr.f32.mxu0 0.0
      %1141 = vmatmul.mubr.f32.gmra.mrb[0].mxu0 %v904
      %v1142 = vpop.f32.mrb[0].mxu0
      %v1143 = vadd.f32 0.0, %v1142
      %v1144 = vpop.f32.mrb[0].mxu0
      %1145 = vdwg.mxu0
      %1146 = vmatprep.subr.mxu0 0.0
      %1147 = vmatpush1.msra.mxu0 %v857
      %1148 = vmatprep.subr.mxu0 0.0
      %1149 = vmatpush1.msra.mxu0 %v858
      %1150 = vmatprep.subr.mxu0 0.0
      %1151 = vmatpush1.msra.mxu0 %v859
      %1152 = vmatprep.subr.mxu0 0.0
      %1153 = vmatpush1.msra.mxu0 %v860
      %1154 = vmatprep.subr.mxu0 0.0
      %1155 = vmatpush1.msra.mxu0 %v861
      %1156 = vmatprep.subr.mxu0 0.0
      %1157 = vmatpush1.msra.mxu0 %v862
      %1158 = vmatprep.subr.mxu0 0.0
      %1159 = vmatpush1.msra.mxu0 %v863
      %1160 = vmatprep.subr.mxu0 0.0
      %1161 = vmatpush1.msra.mxu0 %v864
      %1162 = vmatprep.subr.mxu0 0.0
      %1163 = vmatpush1.msra.mxu0 %v865
      %1164 = vmatprep.subr.mxu0 0.0
      %1165 = vmatpush1.msra.mxu0 %v866
      %1166 = vmatprep.subr.mxu0 0.0
      %1167 = vmatpush1.msra.mxu0 %v867
      %1168 = vmatprep.subr.mxu0 0.0
      %1169 = vmatpush1.msra.mxu0 %v868
      %1170 = vmatprep.subr.mxu0 0.0
      %1171 = vmatpush1.msra.mxu0 %v869
      %1172 = vmatprep.subr.mxu0 0.0
      %1173 = vmatpush1.msra.mxu0 %v870
      %1174 = vmatprep.subr.mxu0 0.0
      %1175 = vmatpush1.msra.mxu0 %v871
      %1176 = vmatprep.subr.mxu0 0.0
      %1177 = vmatpush1.msra.mxu0 %v872
      %1178 = vmatprep.subr.mxu0 0.0
      %1179 = vmatpush1.msra.mxu0 0.0
      %1180 = vmatprep.subr.mxu0 0.0
      %1181 = vmatpush1.msra.mxu0 0.0
      %1182 = vmatprep.subr.mxu0 0.0
      %1183 = vmatpush1.msra.mxu0 0.0
      %1184 = vmatprep.subr.mxu0 0.0
      %1185 = vmatpush1.msra.mxu0 0.0
      %1186 = vmatprep.subr.mxu0 0.0
      %1187 = vmatpush1.msra.mxu0 0.0
      %1188 = vmatprep.subr.mxu0 0.0
      %1189 = vmatpush1.msra.mxu0 0.0
      %1190 = vmatprep.subr.mxu0 0.0
      %1191 = vmatpush1.msra.mxu0 0.0
      %1192 = vmatprep.subr.mxu0 0.0
      %1193 = vmatpush1.msra.mxu0 0.0
      %1194 = vmatprep.subr.mxu0 0.0
      %1195 = vmatpush1.msra.mxu0 0.0
      %1196 = vmatprep.subr.mxu0 0.0
      %1197 = vmatpush1.msra.mxu0 0.0
      %1198 = vmatprep.subr.mxu0 0.0
      %1199 = vmatpush1.msra.mxu0 0.0
      %1200 = vmatprep.subr.mxu0 0.0
      %1201 = vmatpush1.msra.mxu0 0.0
      %1202 = vmatprep.subr.mxu0 0.0
      %1203 = vmatpush1.msra.mxu0 0.0
      %1204 = vmatprep.subr.mxu0 0.0
      %1205 = vmatpush1.msra.mxu0 0.0
      %1206 = vmatprep.subr.mxu0 0.0
      %1207 = vmatpush1.msra.mxu0 0.0
      %1208 = vmatprep.subr.mxu0 0.0
      %1209 = vmatpush1.msra.mxu0 0.0
      %1210 = vmatprep.mubr.f32.mxu0 0.0
      %1211 = vmatmul.mubr.f32.gmra.mrb[0].mxu0 %v699
      %v1212 = vpop.f32.mrb[0].mxu0
      %v1213 = vadd.f32 %v988, %v1212
      %v1214 = vpop.f32.mrb[0].mxu0
      %1215 = vmatprep.mubr.f32.mxu0 0.0
      %1216 = vmatmul.mubr.f32.gmra.mrb[0].mxu0 %v704
      %v1217 = vpop.f32.mrb[0].mxu0
      %v1218 = vadd.f32 %v993, %v1217
      %v1219 = vpop.f32.mrb[0].mxu0
      %1220 = vmatprep.mubr.f32.mxu0 0.0
      %1221 = vmatmul.mubr.f32.gmra.mrb[0].mxu0 %v709
      %v1222 = vpop.f32.mrb[0].mxu0
      %v1223 = vadd.f32 %v998, %v1222
      %v1224 = vpop.f32.mrb[0].mxu0
      %1225 = vmatprep.mubr.f32.mxu0 0.0
      %1226 = vmatmul.mubr.f32.gmra.mrb[0].mxu0 %v714
      %v1227 = vpop.f32.mrb[0].mxu0
      %v1228 = vadd.f32 %v1003, %v1227
      %v1229 = vpop.f32.mrb[0].mxu0
      %1230 = vmatprep.mubr.f32.mxu0 0.0
      %1231 = vmatmul.mubr.f32.gmra.mrb[0].mxu0 %v719
      %v1232 = vpop.f32.mrb[0].mxu0
      %v1233 = vadd.f32 %v1008, %v1232
      %v1234 = vpop.f32.mrb[0].mxu0
      %1235 = vmatprep.mubr.f32.mxu0 0.0
      %1236 = vmatmul.mubr.f32.gmra.mrb[0].mxu0 %v724
      %v1237 = vpop.f32.mrb[0].mxu0
      %v1238 = vadd.f32 %v1013, %v1237
      %v1239 = vpop.f32.mrb[0].mxu0
      %1240 = vmatprep.mubr.f32.mxu0 0.0
      %1241 = vmatmul.mubr.f32.gmra.mrb[0].mxu0 %v729
      %v1242 = vpop.f32.mrb[0].mxu0
      %v1243 = vadd.f32 %v1018, %v1242
      %v1244 = vpop.f32.mrb[0].mxu0
      %1245 = vmatprep.mubr.f32.mxu0 0.0
      %1246 = vmatmul.mubr.f32.gmra.mrb[0].mxu0 %v734
      %v1247 = vpop.f32.mrb[0].mxu0
      %v1248 = vadd.f32 %v1023, %v1247
      %v1249 = vpop.f32.mrb[0].mxu0
      %1250 = vmatprep.mubr.f32.mxu0 0.0
      %1251 = vmatmul.mubr.f32.gmra.mrb[0].mxu0 %v739
      %v1252 = vpop.f32.mrb[0].mxu0
      %v1253 = vadd.f32 %v1028, %v1252
      %v1254 = vpop.f32.mrb[0].mxu0
      %1255 = vmatprep.mubr.f32.mxu0 0.0
      %1256 = vmatmul.mubr.f32.gmra.mrb[0].mxu0 %v744
      %v1257 = vpop.f32.mrb[0].mxu0
      %v1258 = vadd.f32 %v1033, %v1257
      %v1259 = vpop.f32.mrb[0].mxu0
      %1260 = vmatprep.mubr.f32.mxu0 0.0
      %1261 = vmatmul.mubr.f32.gmra.mrb[0].mxu0 %v749
      %v1262 = vpop.f32.mrb[0].mxu0
      %v1263 = vadd.f32 %v1038, %v1262
      %v1264 = vpop.f32.mrb[0].mxu0
      %1265 = vmatprep.mubr.f32.mxu0 0.0
      %1266 = vmatmul.mubr.f32.gmra.mrb[0].mxu0 %v754
      %v1267 = vpop.f32.mrb[0].mxu0
      %v1268 = vadd.f32 %v1043, %v1267
      %v1269 = vpop.f32.mrb[0].mxu0
      %1270 = vmatprep.mubr.f32.mxu0 0.0
      %1271 = vmatmul.mubr.f32.gmra.mrb[0].mxu0 %v759
      %v1272 = vpop.f32.mrb[0].mxu0
      %v1273 = vadd.f32 %v1048, %v1272
      %v1274 = vpop.f32.mrb[0].mxu0
      %1275 = vmatprep.mubr.f32.mxu0 0.0
      %1276 = vmatmul.mubr.f32.gmra.mrb[0].mxu0 %v764
      %v1277 = vpop.f32.mrb[0].mxu0
      %v1278 = vadd.f32 %v1053, %v1277
      %v1279 = vpop.f32.mrb[0].mxu0
      %1280 = vmatprep.mubr.f32.mxu0 0.0
      %1281 = vmatmul.mubr.f32.gmra.mrb[0].mxu0 %v769
      %v1282 = vpop.f32.mrb[0].mxu0
      %v1283 = vadd.f32 %v1058, %v1282
      %v1284 = vpop.f32.mrb[0].mxu0
      %1285 = vmatprep.mubr.f32.mxu0 0.0
      %1286 = vmatmul.mubr.f32.gmra.mrb[0].mxu0 %v774
      %v1287 = vpop.f32.mrb[0].mxu0
      %v1288 = vadd.f32 %v1063, %v1287
      %v1289 = vpop.f32.mrb[0].mxu0
      %1290 = vmatprep.mubr.f32.mxu0 0.0
      %1291 = vmatmul.mubr.f32.gmra.mrb[0].mxu0 %v779
      %v1292 = vpop.f32.mrb[0].mxu0
      %v1293 = vadd.f32 %v1068, %v1292
      %v1294 = vpop.f32.mrb[0].mxu0
      %1295 = vmatprep.mubr.f32.mxu0 0.0
      %1296 = vmatmul.mubr.f32.gmra.mrb[0].mxu0 %v784
      %v1297 = vpop.f32.mrb[0].mxu0
      %v1298 = vadd.f32 %v1073, %v1297
      %v1299 = vpop.f32.mrb[0].mxu0
      %1300 = vmatprep.mubr.f32.mxu0 0.0
      %1301 = vmatmul.mubr.f32.gmra.mrb[0].mxu0 %v789
      %v1302 = vpop.f32.mrb[0].mxu0
      %v1303 = vadd.f32 %v1078, %v1302
      %v1304 = vpop.f32.mrb[0].mxu0
      %1305 = vmatprep.mubr.f32.mxu0 0.0
      %1306 = vmatmul.mubr.f32.gmra.mrb[0].mxu0 %v794
      %v1307 = vpop.f32.mrb[0].mxu0
      %v1308 = vadd.f32 %v1083, %v1307
      %v1309 = vpop.f32.mrb[0].mxu0
      %1310 = vmatprep.mubr.f32.mxu0 0.0
      %1311 = vmatmul.mubr.f32.gmra.mrb[0].mxu0 %v799
      %v1312 = vpop.f32.mrb[0].mxu0
      %v1313 = vadd.f32 %v1088, %v1312
      %v1314 = vpop.f32.mrb[0].mxu0
      %1315 = vmatprep.mubr.f32.mxu0 0.0
      %1316 = vmatmul.mubr.f32.gmra.mrb[0].mxu0 %v804
      %v1317 = vpop.f32.mrb[0].mxu0
      %v1318 = vadd.f32 %v1093, %v1317
      %v1319 = vpop.f32.mrb[0].mxu0
      %1320 = vmatprep.mubr.f32.mxu0 0.0
      %1321 = vmatmul.mubr.f32.gmra.mrb[0].mxu0 %v809
      %v1322 = vpop.f32.mrb[0].mxu0
      %v1323 = vadd.f32 %v1098, %v1322
      %v1324 = vpop.f32.mrb[0].mxu0
      %1325 = vmatprep.mubr.f32.mxu0 0.0
      %1326 = vmatmul.mubr.f32.gmra.mrb[0].mxu0 %v814
      %v1327 = vpop.f32.mrb[0].mxu0
      %v1328 = vadd.f32 %v1103, %v1327
      %v1329 = vpop.f32.mrb[0].mxu0
      %1330 = vmatprep.mubr.f32.mxu0 0.0
      %1331 = vmatmul.mubr.f32.gmra.mrb[0].mxu0 %v819
      %v1332 = vpop.f32.mrb[0].mxu0
      %v1333 = vadd.f32 %v1108, %v1332
      %v1334 = vpop.f32.mrb[0].mxu0
      %1335 = vmatprep.mubr.f32.mxu0 0.0
      %1336 = vmatmul.mubr.f32.gmra.mrb[0].mxu0 %v824
      %v1337 = vpop.f32.mrb[0].mxu0
      %v1338 = vadd.f32 %v1113, %v1337
      %v1339 = vpop.f32.mrb[0].mxu0
      %1340 = vmatprep.mubr.f32.mxu0 0.0
      %1341 = vmatmul.mubr.f32.gmra.mrb[0].mxu0 %v829
      %v1342 = vpop.f32.mrb[0].mxu0
      %v1343 = vadd.f32 %v1118, %v1342
      %v1344 = vpop.f32.mrb[0].mxu0
      %1345 = vmatprep.mubr.f32.mxu0 0.0
      %1346 = vmatmul.mubr.f32.gmra.mrb[0].mxu0 %v834
      %v1347 = vpop.f32.mrb[0].mxu0
      %v1348 = vadd.f32 %v1123, %v1347
      %v1349 = vpop.f32.mrb[0].mxu0
      %1350 = vmatprep.mubr.f32.mxu0 0.0
      %1351 = vmatmul.mubr.f32.gmra.mrb[0].mxu0 %v839
      %v1352 = vpop.f32.mrb[0].mxu0
      %v1353 = vadd.f32 %v1128, %v1352
      %v1354 = vpop.f32.mrb[0].mxu0
      %1355 = vmatprep.mubr.f32.mxu0 0.0
      %1356 = vmatmul.mubr.f32.gmra.mrb[0].mxu0 %v844
      %v1357 = vpop.f32.mrb[0].mxu0
      %v1358 = vadd.f32 %v1133, %v1357
      %v1359 = vpop.f32.mrb[0].mxu0
      %1360 = vmatprep.mubr.f32.mxu0 0.0
      %1361 = vmatmul.mubr.f32.gmra.mrb[0].mxu0 %v849
      %v1362 = vpop.f32.mrb[0].mxu0
      %v1363 = vadd.f32 %v1138, %v1362
      %v1364 = vpop.f32.mrb[0].mxu0
      %1365 = vmatprep.mubr.f32.mxu0 0.0
      %1366 = vmatmul.mubr.f32.gmra.mrb[0].mxu0 %v854
      %v1367 = vpop.f32.mrb[0].mxu0
      %v1368 = vadd.f32 %v1143, %v1367
      %v1369 = vpop.f32.mrb[0].mxu0
      %1370 = vdwg.mxu0
      %v1371 = vld [vmem:[%s5] sm:$0x1]
      %v1373 = vlaneseq
      %v1374 = vshrl.u32 %v1373, 7
      %v1375 = vsub.s32 0, %v1374
      %v1376 = vrot.slane %v1371, %v1375
      %v1378 = vadd.f32 %v1213, %v1376
      %v1379 = vadd.f32 %v1218, %v1376
      %v1380 = vadd.f32 %v1223, %v1376
      %v1381 = vadd.f32 %v1228, %v1376
      %v1382 = vadd.f32 %v1233, %v1376
      %v1383 = vadd.f32 %v1238, %v1376
      %v1384 = vadd.f32 %v1243, %v1376
      %v1385 = vadd.f32 %v1248, %v1376
      %v1386 = vadd.f32 %v1253, %v1376
      %v1387 = vadd.f32 %v1258, %v1376
      %v1388 = vadd.f32 %v1263, %v1376
      %v1389 = vadd.f32 %v1268, %v1376
      %v1390 = vadd.f32 %v1273, %v1376
      %v1391 = vadd.f32 %v1278, %v1376
      %v1392 = vadd.f32 %v1283, %v1376
      %v1393 = vadd.f32 %v1288, %v1376
      %v1394 = vadd.f32 %v1293, %v1376
      %v1395 = vadd.f32 %v1298, %v1376
      %v1396 = vadd.f32 %v1303, %v1376
      %v1397 = vadd.f32 %v1308, %v1376
      %v1398 = vadd.f32 %v1313, %v1376
      %v1399 = vadd.f32 %v1318, %v1376
      %v1400 = vadd.f32 %v1323, %v1376
      %v1401 = vadd.f32 %v1328, %v1376
      %v1402 = vadd.f32 %v1333, %v1376
      %v1403 = vadd.f32 %v1338, %v1376
      %v1404 = vadd.f32 %v1343, %v1376
      %v1405 = vadd.f32 %v1348, %v1376
      %v1406 = vadd.f32 %v1353, %v1376
      %v1407 = vadd.f32 %v1358, %v1376
      %v1408 = vadd.f32 %v1363, %v1376
      %v1409 = vadd.f32 %v1368, %v1376
      %v1410 = vmax.f32 %v1378, 0.0
      %v1411 = vmax.f32 %v1379, 0.0
      %v1412 = vmax.f32 %v1380, 0.0
      %v1413 = vmax.f32 %v1381, 0.0
      %v1414 = vmax.f32 %v1382, 0.0
      %v1415 = vmax.f32 %v1383, 0.0
      %v1416 = vmax.f32 %v1384, 0.0
      %v1417 = vmax.f32 %v1385, 0.0
      %v1418 = vmax.f32 %v1386, 0.0
      %v1419 = vmax.f32 %v1387, 0.0
      %v1420 = vmax.f32 %v1388, 0.0
      %v1421 = vmax.f32 %v1389, 0.0
      %v1422 = vmax.f32 %v1390, 0.0
      %v1423 = vmax.f32 %v1391, 0.0
      %v1424 = vmax.f32 %v1392, 0.0
      %v1425 = vmax.f32 %v1393, 0.0
      %v1426 = vmax.f32 %v1394, 0.0
      %v1427 = vmax.f32 %v1395, 0.0
      %v1428 = vmax.f32 %v1396, 0.0
      %v1429 = vmax.f32 %v1397, 0.0
      %v1430 = vmax.f32 %v1398, 0.0
      %v1431 = vmax.f32 %v1399, 0.0
      %v1432 = vmax.f32 %v1400, 0.0
      %v1433 = vmax.f32 %v1401, 0.0
      %v1434 = vmax.f32 %v1402, 0.0
      %v1435 = vmax.f32 %v1403, 0.0
      %v1436 = vmax.f32 %v1404, 0.0
      %v1437 = vmax.f32 %v1405, 0.0
      %v1438 = vmax.f32 %v1406, 0.0
      %v1439 = vmax.f32 %v1407, 0.0
      %v1440 = vmax.f32 %v1408, 0.0
      %v1441 = vmax.f32 %v1409, 0.0
      %1442 = vst [vmem:[%s275] sm:$0xff] %v1410
      %1443 = vst [vmem:[%s275 + $0x8] sm:$0xff] %v1411
      %1444 = vst [vmem:[%s275 + $0x10] sm:$0xff] %v1412
      %1445 = vst [vmem:[%s275 + $0x18] sm:$0xff] %v1413
      %1446 = vst [vmem:[%s275 + $0x20] sm:$0xff] %v1414
      %1447 = vst [vmem:[%s275 + $0x28] sm:$0xff] %v1415
      %1448 = vst [vmem:[%s275 + $0x30] sm:$0xff] %v1416
      %1449 = vst [vmem:[%s275 + $0x38] sm:$0xff] %v1417
      %1450 = vst [vmem:[%s275 + $0x40] sm:$0xff] %v1418
      %1451 = vst [vmem:[%s275 + $0x48] sm:$0xff] %v1419
      %1452 = vst [vmem:[%s275 + $0x50] sm:$0xff] %v1420
      %1453 = vst [vmem:[%s275 + $0x58] sm:$0xff] %v1421
      %1454 = vst [vmem:[%s275 + $0x60] sm:$0xff] %v1422
      %1455 = vst [vmem:[%s275 + $0x68] sm:$0xff] %v1423
      %1456 = vst [vmem:[%s275 + $0x70] sm:$0xff] %v1424
      %1457 = vst [vmem:[%s275 + $0x78] sm:$0xff] %v1425
      %1458 = vst [vmem:[%s275 + $0x80] sm:$0xff] %v1426
      %1459 = vst [vmem:[%s275 + $0x88] sm:$0xff] %v1427
      %1460 = vst [vmem:[%s275 + $0x90] sm:$0xff] %v1428
      %1461 = vst [vmem:[%s275 + $0x98] sm:$0xff] %v1429
      %1462 = vst [vmem:[%s275 + $0xa0] sm:$0xff] %v1430
      %1463 = vst [vmem:[%s275 + $0xa8] sm:$0xff] %v1431
      %1464 = vst [vmem:[%s275 + $0xb0] sm:$0xff] %v1432
      %1465 = vst [vmem:[%s275 + $0xb8] sm:$0xff] %v1433
      %1466 = vst [vmem:[%s275 + $0xc0] sm:$0xff] %v1434
      %1467 = vst [vmem:[%s275 + $0xc8] sm:$0xff] %v1435
      %1468 = vst [vmem:[%s275 + $0xd0] sm:$0xff] %v1436
      %1469 = vst [vmem:[%s275 + $0xd8] sm:$0xff] %v1437
      %1470 = vst [vmem:[%s275 + $0xe0] sm:$0xff] %v1438
      %1471 = vst [vmem:[%s275 + $0xe8] sm:$0xff] %v1439
      %1472 = vst [vmem:[%s275 + $0xf0] sm:$0xff] %v1440
      %1473 = vst [vmem:[%s275 + $0xf8] sm:$0xff] %v1441
      %s1474 = smul.u32 32, %s17
      %p1475 = scmp.lt.s32.totalorder %s1474, 95
      %s1476 = scalar_select %p1475, %s1474, 95
      %s1477 = smul.addr %s1476, 8
      %s1478 = scalar_lea.vmem %s6, %s1477
      // Predicated region
      $region45: #{gcn2_forward.6} parent=43 // pred_check
        %p1479 = pneg %p171
      $region46: #{gcn2_forward.6} parent=43 // pred_check_branch
        %1481 = sbr.rel (%p1479) target = $region48
      $region47: #{gcn2_forward.6} parent=43 // pred_region
        %s1482 = smul.u32 32, %s17
      $region48: #{gcn2_forward.6} parent=43 // pred_fallthru
        _
    $region44: #{gcn2_forward.6} parent=5 // pred_fallthru
      _
    %p1483 = scmp.le.s32.totalorder 2, %s12
    // Predicated region
    $region49: #{gcn2_forward.6} parent=5 // pred_check
      %p1484 = pneg %p1483
    $region50: #{gcn2_forward.6} parent=5 // pred_check_branch
      %1486 = sbr.rel (%p1484) target = $region52
    $region51: #{gcn2_forward.6} parent=5 // pred_region
      %s1487 = ssub.s32 %s12, 2
      // Predicated region
      $region53: #{gcn2_forward.6} parent=51 // pred_check
        %p1488 = pneg %p177
      $region54: #{gcn2_forward.6} parent=51 // pred_check_branch
        %1490 = sbr.rel (%p1488) target = $region56
      $region55: #{gcn2_forward.6} parent=51 // pred_region
        %s1491 = smul.u32 32, %s18
        %p1492 = scmp.lt.s32.totalorder %s1491, 95
        %s1493 = scalar_select %p1492, %s1491, 95
        %s1494 = smul.addr %s1493, 8
        %s1495 = scalar_lea.vmem %s6, %s1494
      $region56: #{gcn2_forward.6} parent=51 // pred_fallthru
        _
    $region52: #{gcn2_forward.6} parent=5 // pred_fallthru
      _
  $region6: #{gcn2_forward.6} parent=0 // loop_footer
    %s16 = sadd.s32 1, %s12
  $region7: #{gcn2_forward.6} parent=0 // loop_footer_branch
    %11 = sbr.rel target = $region3
  $region8: #{gcn2_forward.6} parent=0 // loop_exit
    _

</llo_original>
